<compile_context>
chip_gen: v5e
topology: v5e:2x2
jax: 0.10.0
libtpu: 0.0.40
codegen_flags: <defaults>
</compile_context>

<pallas_src>
import numpy as np

import jax
import jax.numpy as jnp
from jax.experimental import pallas as pl
from jax.experimental.pallas import tpu as pltpu


def fused_backbone_kernel(x_ref, w1_ref, b1_ref, w2_ref, b2_ref, o_ref,
                          xpad_ref, apad_ref):
    """Fused [conv3x3 + bias + ReLU] x 2 for one image.

    x_ref : (1, H, W*C1)       input row-major, width*channels on the lane axis
    w1_ref: (3, W*C1, W*C2)    layer-1 row-Toeplitz weights (one matrix per kh tap)
    b1_ref: (1, W*C2)          layer-1 bias, tiled per output pixel
    w2_ref: (3, W*C2, W*C3)    layer-2 row-Toeplitz weights
    b2_ref: (1, W*C3)          layer-2 bias, tiled per output pixel
    o_ref : (1, H, W*C3)       lane-dense output
    xpad_ref: (H+2, W*C1) VMEM scratch, height-padded input
    apad_ref: (H+2, W*C2) VMEM scratch, height-padded layer-1 activation
    """
    H = o_ref.shape[1]

    # ---------------- layer 1: conv3x3 (SAME) + bias + ReLU -----------------
    xpad_ref[...] = jnp.zeros_like(xpad_ref)          # zero pad rows (pad=1)
    xpad_ref[1:H + 1, :] = x_ref[0]                   # interior rows
    acc1 = jnp.zeros((H, w1_ref.shape[-1]), jnp.float32)
    for kh in range(3):                               # 3 row-shifted matmuls
        acc1 += jnp.dot(xpad_ref[kh:kh + H, :], w1_ref[kh],
                        preferred_element_type=jnp.float32)
    a1 = jnp.maximum(acc1 + b1_ref[...], 0.0)         # (H, W*C2), lane-dense

    # -------- layer 2: conv3x3 (SAME) + bias + ReLU (input stays in VMEM) ---
    apad_ref[...] = jnp.zeros_like(apad_ref)
    apad_ref[1:H + 1, :] = a1
    acc2 = jnp.zeros((H, w2_ref.shape[-1]), jnp.float32)
    for kh in range(3):
        acc2 += jnp.dot(apad_ref[kh:kh + H, :], w2_ref[kh],
                        preferred_element_type=jnp.float32)
    o_ref[0] = jnp.maximum(acc2 + b2_ref[...], 0.0).astype(o_ref.dtype)


def fused_backbone_pallas(x_flat, w1t, b1t, w2t, b2t):
    """x_flat: (B, H, W*C1) f32 -> (B, H, W*C3) f32."""
    B, H, WC1 = x_flat.shape
    WC2 = b1t.shape[-1]
    WC3 = b2t.shape[-1]

    grid_spec = pltpu.PrefetchScalarGridSpec(
        num_scalar_prefetch=0,
        grid=(B,),
        in_specs=[
            pl.BlockSpec((1, H, WC1), lambda b: (b, 0, 0)),   # per-image input
            pl.BlockSpec((3, WC1, WC2), lambda b: (0, 0, 0)),  # weights resident
            pl.BlockSpec((1, WC2), lambda b: (0, 0)),
            pl.BlockSpec((3, WC2, WC3), lambda b: (0, 0, 0)),
            pl.BlockSpec((1, WC3), lambda b: (0, 0)),
        ],
        out_specs=pl.BlockSpec((1, H, WC3), lambda b: (b, 0, 0)),
        scratch_shapes=[
            pltpu.VMEM((H + 2, WC1), jnp.float32),   # padded input
            pltpu.VMEM((H + 2, WC2), jnp.float32),   # padded layer-1 activation
        ],
    )
    return pl.pallas_call(
        fused_backbone_kernel,
        out_shape=jax.ShapeDtypeStruct((B, H, WC3), jnp.float32),
        grid_spec=grid_spec,
        compiler_params=pltpu.CompilerParams(
            dimension_semantics=("parallel",)),      # v7x: batch across 2 TCs
    )(x_flat, w1t, b1t, w2t, b2t)


def init_backbone_params(key, channel_plan):
    """Deterministic Kaiming-style init, HWIO conv weights."""
    params = []
    for cin, cout in zip(channel_plan[:-1], channel_plan[1:]):
        key, kw, kb = jax.random.split(key, 3)
        fan_in = 3 * 3 * cin
        w = jax.random.normal(kw, (3, 3, cin, cout), jnp.float32) * (2.0 / fan_in) ** 0.5
        b = jax.random.normal(kb, (cout,), jnp.float32) * 0.01
        params.append((w, b))
    return params


def pack_conv_params(w, b, W):
    """(3,3,Cin,Cout) HWIO conv weights -> row-Toeplitz (3, W*Cin, W*Cout) + tiled bias.

    Width-direction SAME padding is folded into the Toeplitz structure (taps that
    fall outside [0, W) are simply omitted, i.e. zero rows).  One-time host-side
    weight layout transform; the math is identical to Conv2d(pad=1).
    """
    w_np = np.asarray(w, dtype=np.float32)
    _, _, cin, cout = w_np.shape
    wt = np.zeros((3, W * cin, W * cout), np.float32)
    for kh in range(3):
        for kw_ in range(3):
            for wo in range(W):
                wi = wo + kw_ - 1
                if 0 <= wi < W:
                    wt[kh, wi * cin:(wi + 1) * cin,
                       wo * cout:(wo + 1) * cout] = w_np[kh, kw_]
    bt = np.tile(np.asarray(b, np.float32), W).reshape(1, W * cout)
    return jnp.asarray(wt), jnp.asarray(bt)


@jax.jit
def sequential_backbone_forward(x_nchw, packed_params):
    """Mirrors SequentialBackbone.forward for the 2-layer conv+ReLU config.

    x_nchw: (B, Cin, H, W) f32 (PyTorch layout) -> (B, Cout_last, H, W) f32.
    """
    (w1t, b1t), (w2t, b2t) = packed_params
    B, C1, H, W = x_nchw.shape
    C3 = b2t.shape[-1] // W
    # NCHW -> NHWC, then flatten (W, C) onto the lane axis (the reshape is free).
    x_flat = jnp.transpose(x_nchw, (0, 2, 3, 1)).reshape(B, H, W * C1)
    out = fused_backbone_pallas(x_flat, w1t, b1t, w2t, b2t)
    return jnp.transpose(out.reshape(B, H, W, C3), (0, 3, 1, 2))


def reference_forward(x_nchw, params):
    """Pure-JAX reference (matches PyTorch Conv2d(pad=1) + ReLU semantics)."""
    x = jnp.transpose(x_nchw, (0, 2, 3, 1))
    for (w, b) in params:
        x = jax.lax.conv_general_dilated(
            x, w, window_strides=(1, 1), padding="SAME",
            dimension_numbers=("NHWC", "HWIO", "NHWC"))
        x = jnp.maximum(x + b, 0.0)
    return jnp.transpose(x, (0, 3, 1, 2))


if __name__ == "__main__":
    key = jax.random.PRNGKey(0)
    key, kx = jax.random.split(key)

    # Small shapes: batch=2, in_channels=4, spatial=16x16; plan [4 -> 16 -> 32].
    B, C, H, W = 2, 4, 16, 16
    channel_plan = [4, 16, 32]

    x = jax.random.normal(kx, (B, C, H, W), jnp.float32)
    params = init_backbone_params(key, channel_plan)
    packed = tuple(pack_conv_params(w, b, W) for (w, b) in params)

    out = sequential_backbone_forward(x, packed)
    out = jax.block_until_ready(out)

    ref = reference_forward(x, params)
    assert out.shape == (B, channel_plan[-1], H, W), out.shape
    assert jnp.allclose(out, ref, atol=1e-4, rtol=1e-4), float(jnp.max(jnp.abs(out - ref)))

    print("KERNEL_OK")
</pallas_src>

<mosaic_0001>
module attributes {stable_mosaic.version = 11 : i64} {
  func.func @fused_backbone_kernel(%arg0: i32, %arg1: memref<1x16x64xf32, #tpu.memory_space<vmem>>, %arg2: memref<3x64x256xf32, #tpu.memory_space<vmem>>, %arg3: memref<1x256xf32, #tpu.memory_space<vmem>>, %arg4: memref<3x256x512xf32, #tpu.memory_space<vmem>>, %arg5: memref<1x512xf32, #tpu.memory_space<vmem>>, %arg6: memref<1x16x512xf32, #tpu.memory_space<vmem>>, %arg7: memref<18x64xf32, #tpu.memory_space<vmem>>, %arg8: memref<18x256xf32, #tpu.memory_space<vmem>>) attributes {dimension_semantics = [#tpu.dimension_semantics<parallel>], iteration_bounds = array<i64: 2>, scalar_prefetch = 0 : i64, scratch_operands = 2 : i64, tpu.core_type = #tpu.core_type<tc>, window_params = [{transform_indices = @transform_0, window_bounds = array<i64: 1, 16, 64>}, {pipeline_mode = #tpu.pipeline_mode<synchronous>, transform_indices = @transform_1, window_bounds = array<i64: 3, 64, 256>}, {pipeline_mode = #tpu.pipeline_mode<synchronous>, transform_indices = @transform_2, window_bounds = array<i64: 1, 256>}, {pipeline_mode = #tpu.pipeline_mode<synchronous>, transform_indices = @transform_3, window_bounds = array<i64: 3, 256, 512>}, {pipeline_mode = #tpu.pipeline_mode<synchronous>, transform_indices = @transform_4, window_bounds = array<i64: 1, 512>}, {transform_indices = @transform_5, window_bounds = array<i64: 1, 16, 512>}]} {
    %cst = arith.constant 0.000000e+00 : f32
    %0 = vector.broadcast %cst : f32 to vector<18x64xf32>
    %c0 = arith.constant 0 : index
    %c0_0 = arith.constant 0 : index
    %1 = vector.load %arg7[%c0, %c0_0] : memref<18x64xf32, #tpu.memory_space<vmem>>, vector<18x64xf32>
    tpu.vector_store %arg7[%c0, %c0_0], %0 {strides = array<i32>} : memref<18x64xf32, #tpu.memory_space<vmem>>, vector<18x64xf32>,
    %c0_1 = arith.constant 0 : index
    %c0_2 = arith.constant 0 : index
    %c0_3 = arith.constant 0 : index
    %2 = vector.load %arg1[%c0_1, %c0_2, %c0_3] : memref<1x16x64xf32, #tpu.memory_space<vmem>>, vector<1x16x64xf32>
    %3 = vector.shape_cast %2 : vector<1x16x64xf32> to vector<16x64xf32>
    %c1 = arith.constant 1 : index
    %c0_4 = arith.constant 0 : index
    %4 = vector.load %arg7[%c1, %c0_4] : memref<18x64xf32, #tpu.memory_space<vmem>>, vector<16x64xf32>
    tpu.vector_store %arg7[%c1, %c0_4], %3 {strides = array<i32>} : memref<18x64xf32, #tpu.memory_space<vmem>>, vector<16x64xf32>,
    %cst_5 = arith.constant 0.000000e+00 : f32
    %5 = vector.broadcast %cst_5 : f32 to vector<16x256xf32>
    %c0_6 = arith.constant 0 : index
    %c0_7 = arith.constant 0 : index
    %6 = vector.load %arg7[%c0_6, %c0_7] : memref<18x64xf32, #tpu.memory_space<vmem>>, vector<16x64xf32>
    %c0_8 = arith.constant 0 : index
    %c0_9 = arith.constant 0 : index
    %c0_10 = arith.constant 0 : index
    %7 = vector.load %arg2[%c0_8, %c0_9, %c0_10] : memref<3x64x256xf32, #tpu.memory_space<vmem>>, vector<1x64x256xf32>
    %8 = vector.shape_cast %7 : vector<1x64x256xf32> to vector<64x256xf32>
    %cst_11 = arith.constant dense<0.000000e+00> : vector<16x256xf32>
    %9 = tpu.matmul %6, %8, %cst_11 {dimension_numbers = #tpu.dot_dimension_numbers<[1], [0], [0], [1], [0, 0, 1, 1], [], []>} : vector<16x64xf32>, vector<64x256xf32>, vector<16x256xf32> -> vector<16x256xf32>
    %10 = arith.addf %5, %9 : vector<16x256xf32>
    %c1_12 = arith.constant 1 : index
    %c0_13 = arith.constant 0 : index
    %11 = vector.load %arg7[%c1_12, %c0_13] : memref<18x64xf32, #tpu.memory_space<vmem>>, vector<16x64xf32>
    %c1_14 = arith.constant 1 : index
    %c0_15 = arith.constant 0 : index
    %c0_16 = arith.constant 0 : index
    %12 = vector.load %arg2[%c1_14, %c0_15, %c0_16] : memref<3x64x256xf32, #tpu.memory_space<vmem>>, vector<1x64x256xf32>
    %13 = vector.shape_cast %12 : vector<1x64x256xf32> to vector<64x256xf32>
    %cst_17 = arith.constant dense<0.000000e+00> : vector<16x256xf32>
    %14 = tpu.matmul %11, %13, %cst_17 {dimension_numbers = #tpu.dot_dimension_numbers<[1], [0], [0], [1], [0, 0, 1, 1], [], []>} : vector<16x64xf32>, vector<64x256xf32>, vector<16x256xf32> -> vector<16x256xf32>
    %15 = arith.addf %10, %14 : vector<16x256xf32>
    %c2 = arith.constant 2 : index
    %c0_18 = arith.constant 0 : index
    %16 = vector.load %arg7[%c2, %c0_18] : memref<18x64xf32, #tpu.memory_space<vmem>>, vector<16x64xf32>
    %c2_19 = arith.constant 2 : index
    %c0_20 = arith.constant 0 : index
    %c0_21 = arith.constant 0 : index
    %17 = vector.load %arg2[%c2_19, %c0_20, %c0_21] : memref<3x64x256xf32, #tpu.memory_space<vmem>>, vector<1x64x256xf32>
    %18 = vector.shape_cast %17 : vector<1x64x256xf32> to vector<64x256xf32>
    %cst_22 = arith.constant dense<0.000000e+00> : vector<16x256xf32>
    %19 = tpu.matmul %16, %18, %cst_22 {dimension_numbers = #tpu.dot_dimension_numbers<[1], [0], [0], [1], [0, 0, 1, 1], [], []>} : vector<16x64xf32>, vector<64x256xf32>, vector<16x256xf32> -> vector<16x256xf32>
    %20 = arith.addf %15, %19 : vector<16x256xf32>
    %c0_23 = arith.constant 0 : index
    %c0_24 = arith.constant 0 : index
    %21 = vector.load %arg3[%c0_23, %c0_24] : memref<1x256xf32, #tpu.memory_space<vmem>>, vector<1x256xf32>
    %22 = vector.broadcast %21 : vector<1x256xf32> to vector<16x256xf32>
    %23 = arith.addf %20, %22 : vector<16x256xf32>
    %cst_25 = arith.constant 0.000000e+00 : f32
    %24 = vector.broadcast %cst_25 : f32 to vector<16x256xf32>
    %25 = arith.maximumf %23, %24 : vector<16x256xf32>
    %cst_26 = arith.constant 0.000000e+00 : f32
    %26 = vector.broadcast %cst_26 : f32 to vector<18x256xf32>
    %c0_27 = arith.constant 0 : index
    %c0_28 = arith.constant 0 : index
    %27 = vector.load %arg8[%c0_27, %c0_28] : memref<18x256xf32, #tpu.memory_space<vmem>>, vector<18x256xf32>
    tpu.vector_store %arg8[%c0_27, %c0_28], %26 {strides = array<i32>} : memref<18x256xf32, #tpu.memory_space<vmem>>, vector<18x256xf32>,
    %c1_29 = arith.constant 1 : index
    %c0_30 = arith.constant 0 : index
    %28 = vector.load %arg8[%c1_29, %c0_30] : memref<18x256xf32, #tpu.memory_space<vmem>>, vector<16x256xf32>
    tpu.vector_store %arg8[%c1_29, %c0_30], %25 {strides = array<i32>} : memref<18x256xf32, #tpu.memory_space<vmem>>, vector<16x256xf32>,
    %cst_31 = arith.constant 0.000000e+00 : f32
    %29 = vector.broadcast %cst_31 : f32 to vector<16x512xf32>
    %c0_32 = arith.constant 0 : index
    %c0_33 = arith.constant 0 : index
    %30 = vector.load %arg8[%c0_32, %c0_33] : memref<18x256xf32, #tpu.memory_space<vmem>>, vector<16x256xf32>
    %c0_34 = arith.constant 0 : index
    %c0_35 = arith.constant 0 : index
    %c0_36 = arith.constant 0 : index
    %31 = vector.load %arg4[%c0_34, %c0_35, %c0_36] : memref<3x256x512xf32, #tpu.memory_space<vmem>>, vector<1x256x512xf32>
    %32 = vector.shape_cast %31 : vector<1x256x512xf32> to vector<256x512xf32>
    %cst_37 = arith.constant dense<0.000000e+00> : vector<16x512xf32>
    %33 = tpu.matmul %30, %32, %cst_37 {dimension_numbers = #tpu.dot_dimension_numbers<[1], [0], [0], [1], [0, 0, 1, 1], [], []>} : vector<16x256xf32>, vector<256x512xf32>, vector<16x512xf32> -> vector<16x512xf32>
    %34 = arith.addf %29, %33 : vector<16x512xf32>
    %c1_38 = arith.constant 1 : index
    %c0_39 = arith.constant 0 : index
    %35 = vector.load %arg8[%c1_38, %c0_39] : memref<18x256xf32, #tpu.memory_space<vmem>>, vector<16x256xf32>
    %c1_40 = arith.constant 1 : index
    %c0_41 = arith.constant 0 : index
    %c0_42 = arith.constant 0 : index
    %36 = vector.load %arg4[%c1_40, %c0_41, %c0_42] : memref<3x256x512xf32, #tpu.memory_space<vmem>>, vector<1x256x512xf32>
    %37 = vector.shape_cast %36 : vector<1x256x512xf32> to vector<256x512xf32>
    %cst_43 = arith.constant dense<0.000000e+00> : vector<16x512xf32>
    %38 = tpu.matmul %35, %37, %cst_43 {dimension_numbers = #tpu.dot_dimension_numbers<[1], [0], [0], [1], [0, 0, 1, 1], [], []>} : vector<16x256xf32>, vector<256x512xf32>, vector<16x512xf32> -> vector<16x512xf32>
    %39 = arith.addf %34, %38 : vector<16x512xf32>
    %c2_44 = arith.constant 2 : index
    %c0_45 = arith.constant 0 : index
    %40 = vector.load %arg8[%c2_44, %c0_45] : memref<18x256xf32, #tpu.memory_space<vmem>>, vector<16x256xf32>
    %c2_46 = arith.constant 2 : index
    %c0_47 = arith.constant 0 : index
    %c0_48 = arith.constant 0 : index
    %41 = vector.load %arg4[%c2_46, %c0_47, %c0_48] : memref<3x256x512xf32, #tpu.memory_space<vmem>>, vector<1x256x512xf32>
    %42 = vector.shape_cast %41 : vector<1x256x512xf32> to vector<256x512xf32>
    %cst_49 = arith.constant dense<0.000000e+00> : vector<16x512xf32>
    %43 = tpu.matmul %40, %42, %cst_49 {dimension_numbers = #tpu.dot_dimension_numbers<[1], [0], [0], [1], [0, 0, 1, 1], [], []>} : vector<16x256xf32>, vector<256x512xf32>, vector<16x512xf32> -> vector<16x512xf32>
    %44 = arith.addf %39, %43 : vector<16x512xf32>
    %c0_50 = arith.constant 0 : index
    %c0_51 = arith.constant 0 : index
    %45 = vector.load %arg5[%c0_50, %c0_51] : memref<1x512xf32, #tpu.memory_space<vmem>>, vector<1x512xf32>
    %46 = vector.broadcast %45 : vector<1x512xf32> to vector<16x512xf32>
    %47 = arith.addf %44, %46 : vector<16x512xf32>
    %cst_52 = arith.constant 0.000000e+00 : f32
    %48 = vector.broadcast %cst_52 : f32 to vector<16x512xf32>
    %49 = arith.maximumf %47, %48 : vector<16x512xf32>
    %c0_53 = arith.constant 0 : index
    %c0_54 = arith.constant 0 : index
    %c0_55 = arith.constant 0 : index
    %50 = vector.load %arg6[%c0_53, %c0_54, %c0_55] : memref<1x16x512xf32, #tpu.memory_space<vmem>>, vector<1x16x512xf32>
    %51 = vector.shape_cast %50 : vector<1x16x512xf32> to vector<16x512xf32>
    %52 = vector.shape_cast %49 : vector<16x512xf32> to vector<1x16x512xf32>
    tpu.vector_store %arg6[%c0_53, %c0_54, %c0_55], %52 {strides = array<i32>} : memref<1x16x512xf32, #tpu.memory_space<vmem>>, vector<1x16x512xf32>,
    return
  }
  func.func @transform_0(%arg0: i32) -> (i32, i32, i32) {
    %c0_i32 = arith.constant 0 : i32
    %c0_i32_0 = arith.constant 0 : i32
    %c0_i32_1 = arith.constant 0 : i32
    return %arg0, %c0_i32, %c0_i32_0 : i32, i32, i32
  }
  func.func @transform_1(%arg0: i32) -> (i32, i32, i32) {
    %c0_i32 = arith.constant 0 : i32
    %c0_i32_0 = arith.constant 0 : i32
    %c0_i32_1 = arith.constant 0 : i32
    %c0_i32_2 = arith.constant 0 : i32
    return %c0_i32, %c0_i32_0, %c0_i32_1 : i32, i32, i32
  }
  func.func @transform_2(%arg0: i32) -> (i32, i32) {
    %c0_i32 = arith.constant 0 : i32
    %c0_i32_0 = arith.constant 0 : i32
    %c0_i32_1 = arith.constant 0 : i32
    return %c0_i32, %c0_i32_0 : i32, i32
  }
  func.func @transform_3(%arg0: i32) -> (i32, i32, i32) {
    %c0_i32 = arith.constant 0 : i32
    %c0_i32_0 = arith.constant 0 : i32
    %c0_i32_1 = arith.constant 0 : i32
    %c0_i32_2 = arith.constant 0 : i32
    return %c0_i32, %c0_i32_0, %c0_i32_1 : i32, i32, i32
  }
  func.func @transform_4(%arg0: i32) -> (i32, i32) {
    %c0_i32 = arith.constant 0 : i32
    %c0_i32_0 = arith.constant 0 : i32
    %c0_i32_1 = arith.constant 0 : i32
    return %c0_i32, %c0_i32_0 : i32, i32
  }
  func.func @transform_5(%arg0: i32) -> (i32, i32, i32) {
    %c0_i32 = arith.constant 0 : i32
    %c0_i32_0 = arith.constant 0 : i32
    %c0_i32_1 = arith.constant 0 : i32
    return %arg0, %c0_i32, %c0_i32_0 : i32, i32, i32
  }
}

</mosaic_0001>

<llo_original>
// kernel: sequential_backbone_forward.1
$region0: #{sequential_backbone_forward.1}
  #allocation0 [shape = 'u32[]', space=smem, size = 0x4, offset = 0x4, fixed_abs, tag = 'smem constant byte address 0x4 - core index']
  #allocation1 [shape = 'u32[72,128]{1,0:T(1,128)}', space=vmem, size = 0x9000, scoped, tag = 'internal scratch']
  #allocation2 [shape = 'f32[18,64]{1,0:T(8,128)}', space=vmem, size = 0x3000, scoped, tag = 'scratch operand']
  #allocation3 [shape = 'f32[18,256]{1,0:T(8,128)}', space=vmem, size = 0x6000, scoped, tag = 'scratch operand']
  %s0 = inlined_call_operand.vmem [shape: f32[2,16,64], index: 0, kind: input, shape index: {}]
  %s1 = inlined_call_operand.hbm [shape: f32[3,64,256], index: 1, kind: input, shape index: {}]
  %s2 = inlined_call_operand.hbm [shape: f32[1,256], index: 2, kind: input, shape index: {}]
  %s3 = inlined_call_operand.hbm [shape: f32[3,256,512], index: 3, kind: input, shape index: {}]
  %s4 = inlined_call_operand.hbm [shape: f32[1,512], index: 4, kind: input, shape index: {}]
  %s5 = inlined_call_operand.vmem [shape: f32[2,16,512], index: 5, kind: output, shape index: {}]
  %s6 = sld [smem:[#allocation0]]
  $region69: #{sequential_backbone_forward.1} parent=0
    _
  %s8 = ssub.s32 1, %s6
  %s9 = scalar_select 0, %s8, %s6
  $region1: #{sequential_backbone_forward.1} parent=0
    #allocation4 [shape = 'u8[196608]{0}', space=vmem, size = 0x30000, scoped, tag = 'input window, operand 1, single buffered']
    #allocation5 [shape = 's32[2]{0}', space=sflag, size = 0x8, scoped, tag = 'scoped memory for sequential_backbone_forward.1']
    #allocation6 [shape = 'u8[1024]{0}', space=vmem, size = 0x400, scoped, tag = 'input window, operand 2, single buffered']
    #allocation7 [shape = 's32[1]{0}', space=sflag, size = 0x4, scoped, tag = 'scoped memory for sequential_backbone_forward.1']
    #allocation8 [shape = 'u8[1572864]{0}', space=vmem, size = 0x180000, scoped, tag = 'input window, operand 3, single buffered']
    #allocation9 [shape = 'u8[2048]{0}', space=vmem, size = 0x800, scoped, tag = 'input window, operand 4, single buffered']
    #allocation10 [shape = 's32[1]{0}', space=sflag, size = 0x4, scoped, tag = 'scoped memory for sequential_backbone_forward.1']
    %10 = vsyncpa [#allocation5], 0
    %11 = vsyncpa [#allocation7], 0
    %12 = vsyncpa [#allocation10], 0
    loop: start=0, step=1, limit=4
    $region2: #{sequential_backbone_forward.1} parent=1 // loop_pre_header
      _
    $region3: #{sequential_backbone_forward.1} parent=1 // loop_header
      %s14 = sphi 0, %s18
      %p15 = scmp.ge.s32.totalorder %s14, 4
      %s24 = sphi 0, %s26
      %s27 = sphi 0, %s24
      %s28 = sphi 0, %s27
      %s44 = sphi 0, %s28
      %s48 = sphi 0, %s48
      %s50 = sphi 0, %s48
      %s51 = sphi 0, %s50
      %s65 = sphi 0, %s51
      %s69 = sphi 0, %s69
      %s71 = sphi 0, %s69
      %s72 = sphi 0, %s71
      %s86 = sphi 0, %s72
      %s90 = sphi 0, %s90
      %s92 = sphi 0, %s90
      %s93 = sphi 0, %s92
      %s107 = sphi 0, %s93
      %s111 = sphi 0, %s111
      %s113 = sphi 0, %s111
      %s114 = sphi 0, %s113
      %s128 = sphi 0, %s114
      %s134 = sphi 0, %s136
      %s137 = sphi 0, %s134
      %s138 = sphi 0, %s137
      %s154 = sphi 0, %s138
    $region4: #{sequential_backbone_forward.1} parent=1 // loop_header_branch
      %17 = sbr.rel (%p15) target = $region8
    $region5: #{sequential_backbone_forward.1} parent=1 // loop_body
      %s19 = ssub.s32 %s14, 1
      %s20 = ssub.s32 %s14, 2
      %s21 = sadd.s32 %s14, 1
      %s22 = ssub.s32 %s14, %s21
      %p23 = scmp.eq.s32.totalorder %s22, 0
      %s25 = sadd.s32 %s24, 1
      %s26 = scalar_select %p23, %s24, %s25
      %p29 = pneg %p23
      %p30 = scmp.eq.s32.totalorder %s14, 1
      %p31 = por %p29, %p30
      %p32 = scmp.ne.s32.totalorder %s24, %s27
      %p33 = scmp.eq.s32.totalorder %s14, 0
      %p34 = por %p32, %p33
      %p35 = scmp.ne.s32.totalorder %s24, %s27
      %p36 = scmp.eq.s32.totalorder %s19, 1
      %p37 = por %p35, %p36
      %p38 = scmp.ne.s32.totalorder %s27, %s28
      %p39 = scmp.eq.s32.totalorder %s19, 0
      %p40 = por %p38, %p39
      %p41 = scmp.ne.s32.totalorder %s27, %s28
      %p42 = scmp.eq.s32.totalorder %s20, 1
      %p43 = por %p41, %p42
      %p45 = scmp.ne.s32.totalorder %s28, %s44
      %p46 = scmp.eq.s32.totalorder %s20, 0
      %p47 = por %p45, %p46
      %s49 = sadd.s32 %s48, 1
      %p52 = scmp.eq.s32.totalorder %s14, 1
      %p53 = scmp.ne.s32.totalorder %s48, %s50
      %p54 = scmp.eq.s32.totalorder %s14, 0
      %p55 = por %p53, %p54
      %p56 = scmp.ne.s32.totalorder %s48, %s50
      %p57 = scmp.eq.s32.totalorder %s19, 1
      %p58 = por %p56, %p57
      %p59 = scmp.ne.s32.totalorder %s50, %s51
      %p60 = scmp.eq.s32.totalorder %s19, 0
      %p61 = por %p59, %p60
      %p62 = scmp.ne.s32.totalorder %s50, %s51
      %p63 = scmp.eq.s32.totalorder %s20, 1
      %p64 = por %p62, %p63
      %p66 = scmp.ne.s32.totalorder %s51, %s65
      %p67 = scmp.eq.s32.totalorder %s20, 0
      %p68 = por %p66, %p67
      %s70 = sadd.s32 %s69, 1
      %p73 = scmp.eq.s32.totalorder %s14, 1
      %p74 = scmp.ne.s32.totalorder %s69, %s71
      %p75 = scmp.eq.s32.totalorder %s14, 0
      %p76 = por %p74, %p75
      %p77 = scmp.ne.s32.totalorder %s69, %s71
      %p78 = scmp.eq.s32.totalorder %s19, 1
      %p79 = por %p77, %p78
      %p80 = scmp.ne.s32.totalorder %s71, %s72
      %p81 = scmp.eq.s32.totalorder %s19, 0
      %p82 = por %p80, %p81
      %p83 = scmp.ne.s32.totalorder %s71, %s72
      %p84 = scmp.eq.s32.totalorder %s20, 1
      %p85 = por %p83, %p84
      %p87 = scmp.ne.s32.totalorder %s72, %s86
      %p88 = scmp.eq.s32.totalorder %s20, 0
      %p89 = por %p87, %p88
      %s91 = sadd.s32 %s90, 1
      %p94 = scmp.eq.s32.totalorder %s14, 1
      %p95 = scmp.ne.s32.totalorder %s90, %s92
      %p96 = scmp.eq.s32.totalorder %s14, 0
      %p97 = por %p95, %p96
      %p98 = scmp.ne.s32.totalorder %s90, %s92
      %p99 = scmp.eq.s32.totalorder %s19, 1
      %p100 = por %p98, %p99
      %p101 = scmp.ne.s32.totalorder %s92, %s93
      %p102 = scmp.eq.s32.totalorder %s19, 0
      %p103 = por %p101, %p102
      %p104 = scmp.ne.s32.totalorder %s92, %s93
      %p105 = scmp.eq.s32.totalorder %s20, 1
      %p106 = por %p104, %p105
      %p108 = scmp.ne.s32.totalorder %s93, %s107
      %p109 = scmp.eq.s32.totalorder %s20, 0
      %p110 = por %p108, %p109
      %s112 = sadd.s32 %s111, 1
      %p115 = scmp.eq.s32.totalorder %s14, 1
      %p116 = scmp.ne.s32.totalorder %s111, %s113
      %p117 = scmp.eq.s32.totalorder %s14, 0
      %p118 = por %p116, %p117
      %p119 = scmp.ne.s32.totalorder %s111, %s113
      %p120 = scmp.eq.s32.totalorder %s19, 1
      %p121 = por %p119, %p120
      %p122 = scmp.ne.s32.totalorder %s113, %s114
      %p123 = scmp.eq.s32.totalorder %s19, 0
      %p124 = por %p122, %p123
      %p125 = scmp.ne.s32.totalorder %s113, %s114
      %p126 = scmp.eq.s32.totalorder %s20, 1
      %p127 = por %p125, %p126
      %p129 = scmp.ne.s32.totalorder %s114, %s128
      %p130 = scmp.eq.s32.totalorder %s20, 0
      %p131 = por %p129, %p130
      %s132 = ssub.s32 %s14, %s21
      %p133 = scmp.eq.s32.totalorder %s132, 0
      %s135 = sadd.s32 %s134, 1
      %s136 = scalar_select %p133, %s134, %s135
      %p139 = pneg %p133
      %p140 = scmp.eq.s32.totalorder %s14, 1
      %p141 = por %p139, %p140
      %p142 = scmp.ne.s32.totalorder %s134, %s137
      %p143 = scmp.eq.s32.totalorder %s14, 0
      %p144 = por %p142, %p143
      %p145 = scmp.ne.s32.totalorder %s134, %s137
      %p146 = scmp.eq.s32.totalorder %s19, 1
      %p147 = por %p145, %p146
      %p148 = scmp.ne.s32.totalorder %s137, %s138
      %p149 = scmp.eq.s32.totalorder %s19, 0
      %p150 = por %p148, %p149
      %p151 = scmp.ne.s32.totalorder %s137, %s138
      %p152 = scmp.eq.s32.totalorder %s20, 1
      %p153 = por %p151, %p152
      %p155 = scmp.ne.s32.totalorder %s138, %s154
      %p156 = scmp.eq.s32.totalorder %s20, 0
      %p157 = por %p155, %p156
      %p158 = scmp.le.s32.totalorder 1, %s14
      %p159 = scmp.lt.s32.totalorder %s14, 3
      %p160 = pnand %p158, %p159
      %p161 = pneg %p160
      // Predicated region
      $region9: #{sequential_backbone_forward.1} parent=5 // pred_check
        _
      $region10: #{sequential_backbone_forward.1} parent=5 // pred_check_branch
        %163 = sbr.rel (%p160) target = $region12
      $region11: #{sequential_backbone_forward.1} parent=5 // pred_region
        %s164 = ssub.s32 %s14, 1
        // Predicated region
        $region13: #{sequential_backbone_forward.1} parent=11 // pred_check
          %p165 = pneg %p61
        $region14: #{sequential_backbone_forward.1} parent=11 // pred_check_branch
          %167 = sbr.rel (%p165) target = $region16
        $region15: #{sequential_backbone_forward.1} parent=11 // pred_region
          %169 = vsyncadd [#allocation5], 0
          %s170 = sshll.u32 %s1, 4
          %s171 = int_to_ptr.hbm [resolvable:$true] %s170
          %s172 = sshll.u32 [#allocation4], 4
          %s173 = int_to_ptr.vmem [resolvable:$true] %s172
          %178 = dma.hbm_to_vmem [thread:$0]  %s171, 6144, %s173, [#allocation5], 256, 256, 16
        $region16: #{sequential_backbone_forward.1} parent=11 // pred_fallthru
          _
        // Predicated region
        $region17: #{sequential_backbone_forward.1} parent=11 // pred_check
          %p179 = pneg %p82
        $region18: #{sequential_backbone_forward.1} parent=11 // pred_check_branch
          %181 = sbr.rel (%p179) target = $region20
        $region19: #{sequential_backbone_forward.1} parent=11 // pred_region
          %183 = vsyncadd [#allocation7], 0
          %s185 = sshll.u32 %s2, 4
          %s186 = int_to_ptr.hbm [resolvable:$true] %s185
          %s187 = sshll.u32 [#allocation6], 4
          %s188 = int_to_ptr.vmem [resolvable:$true] %s187
          %190 = dma.hbm_to_vmem [thread:$0]  %s186, 32, %s188, [#allocation7]
        $region20: #{sequential_backbone_forward.1} parent=11 // pred_fallthru
          _
        // Predicated region
        $region21: #{sequential_backbone_forward.1} parent=11 // pred_check
          %p191 = pneg %p103
        $region22: #{sequential_backbone_forward.1} parent=11 // pred_check_branch
          %193 = sbr.rel (%p191) target = $region24
        $region23: #{sequential_backbone_forward.1} parent=11 // pred_region
          %195 = vsyncadd [#allocation7], 0
          %s196 = sshll.u32 %s3, 4
          %s197 = int_to_ptr.hbm [resolvable:$true] %s196
          %s198 = sshll.u32 [#allocation8], 4
          %s199 = int_to_ptr.vmem [resolvable:$true] %s198
          %204 = dma.hbm_to_vmem [thread:$0]  %s197, 49152, %s199, [#allocation7], 512, 512, 32
        $region24: #{sequential_backbone_forward.1} parent=11 // pred_fallthru
          _
        // Predicated region
        $region25: #{sequential_backbone_forward.1} parent=11 // pred_check
          %p205 = pneg %p124
        $region26: #{sequential_backbone_forward.1} parent=11 // pred_check_branch
          %207 = sbr.rel (%p205) target = $region28
        $region27: #{sequential_backbone_forward.1} parent=11 // pred_region
          %209 = vsyncadd [#allocation10], 0
          %s211 = sshll.u32 %s4, 4
          %s212 = int_to_ptr.hbm [resolvable:$true] %s211
          %s213 = sshll.u32 [#allocation9], 4
          %s214 = int_to_ptr.vmem [resolvable:$true] %s213
          %216 = dma.hbm_to_vmem [thread:$0]  %s212, 64, %s214, [#allocation10]
        $region28: #{sequential_backbone_forward.1} parent=11 // pred_fallthru
          _
      $region12: #{sequential_backbone_forward.1} parent=5 // pred_fallthru
        _
      %p217 = scmp.lt.s32.totalorder %s14, 2
      // Predicated region
      $region29: #{sequential_backbone_forward.1} parent=5 // pred_check
        %p218 = pneg %p217
      $region30: #{sequential_backbone_forward.1} parent=5 // pred_check_branch
        %220 = sbr.rel (%p218) target = $region32
      $region31: #{sequential_backbone_forward.1} parent=5 // pred_region
        // Predicated region
        $region33: #{sequential_backbone_forward.1} parent=31 // pred_check
          %p221 = pneg %p34
        $region34: #{sequential_backbone_forward.1} parent=31 // pred_check_branch
          %223 = sbr.rel (%p221) target = $region36
        $region35: #{sequential_backbone_forward.1} parent=31 // pred_region
          %p224 = scmp.lt.s32.totalorder %s14, 1
          %s225 = scalar_select %p224, %s14, 1
          %s226 = smul.addr %s225, 2
          %s227 = smul.addr %s226, 8
          %s228 = scalar_lea.vmem %s0, %s227
        $region36: #{sequential_backbone_forward.1} parent=31 // pred_fallthru
          _
      $region32: #{sequential_backbone_forward.1} parent=5 // pred_fallthru
        _
      %p229 = scmp.le.s32.totalorder 1, %s14
      %p230 = scmp.lt.s32.totalorder %s14, 3
      %p231 = pnand %p229, %p230
      %p232 = pneg %p231
      // Predicated region
      $region37: #{sequential_backbone_forward.1} parent=5 // pred_check
        _
      $region38: #{sequential_backbone_forward.1} parent=5 // pred_check_branch
        %234 = sbr.rel (%p231) target = $region40
      $region39: #{sequential_backbone_forward.1} parent=5 // pred_region
        %s235 = ssub.s32 %s14, 1
        // Predicated region
        $region41: #{sequential_backbone_forward.1} parent=39 // pred_check
          %p236 = pneg %p61
        $region42: #{sequential_backbone_forward.1} parent=39 // pred_check_branch
          %238 = sbr.rel (%p236) target = $region44
        $region43: #{sequential_backbone_forward.1} parent=39 // pred_region
          %240 = dma.done [#allocation5], 6144
        $region44: #{sequential_backbone_forward.1} parent=39 // pred_fallthru
          _
        // Predicated region
        $region45: #{sequential_backbone_forward.1} parent=39 // pred_check
          %p241 = pneg %p82
        $region46: #{sequential_backbone_forward.1} parent=39 // pred_check_branch
          %243 = sbr.rel (%p241) target = $region48
        $region47: #{sequential_backbone_forward.1} parent=39 // pred_region
          %245 = dma.done [#allocation7], 32
        $region48: #{sequential_backbone_forward.1} parent=39 // pred_fallthru
          _
        // Predicated region
        $region49: #{sequential_backbone_forward.1} parent=39 // pred_check
          %p246 = pneg %p103
        $region50: #{sequential_backbone_forward.1} parent=39 // pred_check_branch
          %248 = sbr.rel (%p246) target = $region52
        $region51: #{sequential_backbone_forward.1} parent=39 // pred_region
          %250 = dma.done [#allocation7], 49152
        $region52: #{sequential_backbone_forward.1} parent=39 // pred_fallthru
          _
        // Predicated region
        $region53: #{sequential_backbone_forward.1} parent=39 // pred_check
          %p251 = pneg %p124
        $region54: #{sequential_backbone_forward.1} parent=39 // pred_check_branch
          %253 = sbr.rel (%p251) target = $region56
        $region55: #{sequential_backbone_forward.1} parent=39 // pred_region
          %255 = dma.done [#allocation10], 64
        $region56: #{sequential_backbone_forward.1} parent=39 // pred_fallthru
          _
        %p256 = scmp.lt.s32.totalorder %s19, 1
        %s257 = scalar_select %p256, %s19, 1
        %s258 = smul.addr %s257, 2
        %s259 = smul.addr %s258, 8
        %s260 = scalar_lea.vmem %s0, %s259
        %p261 = pneg %p40
        %p262 = pneg %p37
        %p263 = pneg %p61
        %p264 = pneg %p58
        %p265 = pneg %p82
        %p266 = pneg %p79
        %p267 = pneg %p103
        %p268 = pneg %p100
        %p269 = pneg %p124
        %p270 = pneg %p121
        %p271 = pneg %p150
        %p272 = pneg %p147
        %p273 = scmp.lt.s32.totalorder %s19, 1
        %s274 = scalar_select %p273, %s19, 1
        %s275 = smul.addr %s274, 8
        %s276 = smul.addr %s275, 8
        %s277 = scalar_lea.vmem %s5, %s276
        %p278 = scmp.lt.s32.totalorder %s19, 1
        %s279 = scalar_select %p278, %s19, 1
        %s280 = smul.addr %s279, 2
        %s281 = smul.addr %s280, 8
        %s282 = scalar_lea.vmem %s0, %s281
        %p283 = scmp.lt.s32.totalorder %s19, 1
        %s284 = scalar_select %p283, %s19, 1
        %s285 = smul.addr %s284, 8
        %s286 = smul.addr %s285, 8
        %s287 = scalar_lea.vmem %s5, %s286
        %vm288 = vcmask 523264
        %289 = vst.msk [vmem:[#allocation2] sm:$0xff] %vm288, 0.0
        %290 = vst.msk [vmem:[#allocation2 + $0x8] sm:$0xff] %vm288, 0.0
        %vm291 = vcmask 517120
        %292 = vst.msk [vmem:[#allocation2 + $0x10] sm:$0x3] %vm291, 0.0
        %v293 = vld [vmem:[%s282] sm:$0xff]
        %v294 = vld [vmem:[%s282 + $0x8] sm:$0xff]
        %295 = vst.msk [vmem:[#allocation2 + $0x1] sm:$0xff] %vm288, %v293
        %296 = vst.msk [vmem:[#allocation2 + $0x9] sm:$0xff] %vm288, %v294
        %v297 = vld [vmem:[#allocation2] sm:$0xff]
        %v298 = vld [vmem:[#allocation2 + $0x8] sm:$0xff]
        %v299 = vld [vmem:[#allocation4] sm:$0xff]
        %v300 = vld [vmem:[#allocation4 + $0x8] sm:$0xff]
        %v301 = vld [vmem:[#allocation4 + $0x10] sm:$0xff]
        %v302 = vld [vmem:[#allocation4 + $0x18] sm:$0xff]
        %v303 = vld [vmem:[#allocation4 + $0x20] sm:$0xff]
        %v304 = vld [vmem:[#allocation4 + $0x28] sm:$0xff]
        %v305 = vld [vmem:[#allocation4 + $0x30] sm:$0xff]
        %v306 = vld [vmem:[#allocation4 + $0x38] sm:$0xff]
        %v307 = vld [vmem:[#allocation4 + $0x40] sm:$0xff]
        %v308 = vld [vmem:[#allocation4 + $0x48] sm:$0xff]
        %v309 = vld [vmem:[#allocation4 + $0x50] sm:$0xff]
        %v310 = vld [vmem:[#allocation4 + $0x58] sm:$0xff]
        %v311 = vld [vmem:[#allocation4 + $0x60] sm:$0xff]
        %v312 = vld [vmem:[#allocation4 + $0x68] sm:$0xff]
        %v313 = vld [vmem:[#allocation4 + $0x70] sm:$0xff]
        %v314 = vld [vmem:[#allocation4 + $0x78] sm:$0xff]
        %v315 = vld [vmem:[#allocation2 + $0x1] sm:$0xff]
        %v316 = vld [vmem:[#allocation2 + $0x9] sm:$0xff]
        %s317 = scalar_lea.vmem [#allocation4], 128
        %v318 = vld [vmem:[%s317] sm:$0xff]
        %v319 = vld [vmem:[%s317 + $0x8] sm:$0xff]
        %v320 = vld [vmem:[%s317 + $0x10] sm:$0xff]
        %v321 = vld [vmem:[%s317 + $0x18] sm:$0xff]
        %v322 = vld [vmem:[%s317 + $0x20] sm:$0xff]
        %v323 = vld [vmem:[%s317 + $0x28] sm:$0xff]
        %v324 = vld [vmem:[%s317 + $0x30] sm:$0xff]
        %v325 = vld [vmem:[%s317 + $0x38] sm:$0xff]
        %v326 = vld [vmem:[%s317 + $0x40] sm:$0xff]
        %v327 = vld [vmem:[%s317 + $0x48] sm:$0xff]
        %v328 = vld [vmem:[%s317 + $0x50] sm:$0xff]
        %v329 = vld [vmem:[%s317 + $0x58] sm:$0xff]
        %v330 = vld [vmem:[%s317 + $0x60] sm:$0xff]
        %v331 = vld [vmem:[%s317 + $0x68] sm:$0xff]
        %v332 = vld [vmem:[%s317 + $0x70] sm:$0xff]
        %v333 = vld [vmem:[%s317 + $0x78] sm:$0xff]
        %v335 = vsel %vm288, %v315, 0
        %v338 = vsel %vm288, %v316, 0
        %340 = vmatpush.msra.mxu0 0.0
        %341 = vmatpush.msra.mxu0 0.0
        %342 = vmatpush.msra.mxu0 0.0
        %343 = vmatpush.msra.mxu0 0.0
        %344 = vmatpush.msra.mxu0 0.0
        %345 = vmatpush.msra.mxu0 0.0
        %346 = vmatpush.msra.mxu0 0.0
        %347 = vmatpush.msra.mxu0 0.0
        %348 = vmatpush.msra.mxu0 %v332
        %349 = vmatpush.msra.mxu0 %v330
        %350 = vmatpush.msra.mxu0 %v328
        %351 = vmatpush.msra.mxu0 %v326
        %352 = vmatpush.msra.mxu0 %v324
        %353 = vmatpush.msra.mxu0 %v322
        %354 = vmatpush.msra.mxu0 %v320
        %355 = vmatpush.msra.mxu0 %v318
        %356 = vmatmul.f32.gmra.mxu0 %v335
        %v357 = vpop.f32.mrf.mxu0
        %v358 = vadd.f32 0.0, %v357
        %359 = vmatmul.f32.gmra.mxu0 %v338
        %v360 = vpop.f32.mrf.mxu0
        %v361 = vadd.f32 0.0, %v360
        %362 = vdwg.mxu0
        %363 = vmatpush.msra.mxu0 0.0
        %364 = vmatpush.msra.mxu0 0.0
        %365 = vmatpush.msra.mxu0 0.0
        %366 = vmatpush.msra.mxu0 0.0
        %367 = vmatpush.msra.mxu0 0.0
        %368 = vmatpush.msra.mxu0 0.0
        %369 = vmatpush.msra.mxu0 0.0
        %370 = vmatpush.msra.mxu0 0.0
        %371 = vmatpush.msra.mxu0 %v333
        %372 = vmatpush.msra.mxu0 %v331
        %373 = vmatpush.msra.mxu0 %v329
        %374 = vmatpush.msra.mxu0 %v327
        %375 = vmatpush.msra.mxu0 %v325
        %376 = vmatpush.msra.mxu0 %v323
        %377 = vmatpush.msra.mxu0 %v321
        %378 = vmatpush.msra.mxu0 %v319
        %379 = vmatmul.f32.gmra.mxu0 %v335
        %v380 = vpop.f32.mrf.mxu0
        %v381 = vadd.f32 0.0, %v380
        %382 = vmatmul.f32.gmra.mxu0 %v338
        %v383 = vpop.f32.mrf.mxu0
        %v384 = vadd.f32 0.0, %v383
        %385 = vdwg.mxu0
        %v387 = vsel %vm288, %v297, 0
        %v390 = vsel %vm288, %v298, 0
        %392 = vmatpush.msra.mxu0 0.0
        %393 = vmatpush.msra.mxu0 0.0
        %394 = vmatpush.msra.mxu0 0.0
        %395 = vmatpush.msra.mxu0 0.0
        %396 = vmatpush.msra.mxu0 0.0
        %397 = vmatpush.msra.mxu0 0.0
        %398 = vmatpush.msra.mxu0 0.0
        %399 = vmatpush.msra.mxu0 0.0
        %400 = vmatpush.msra.mxu0 %v313
        %401 = vmatpush.msra.mxu0 %v311
        %402 = vmatpush.msra.mxu0 %v309
        %403 = vmatpush.msra.mxu0 %v307
        %404 = vmatpush.msra.mxu0 %v305
        %405 = vmatpush.msra.mxu0 %v303
        %406 = vmatpush.msra.mxu0 %v301
        %407 = vmatpush.msra.mxu0 %v299
        %408 = vmatmul.f32.gmra.mxu0 %v387
        %v409 = vpop.f32.mrf.mxu0
        %v410 = vadd.f32 %v358, %v409
        %411 = vmatmul.f32.gmra.mxu0 %v390
        %v412 = vpop.f32.mrf.mxu0
        %v413 = vadd.f32 %v361, %v412
        %414 = vdwg.mxu0
        %415 = vmatpush.msra.mxu0 0.0
        %416 = vmatpush.msra.mxu0 0.0
        %417 = vmatpush.msra.mxu0 0.0
        %418 = vmatpush.msra.mxu0 0.0
        %419 = vmatpush.msra.mxu0 0.0
        %420 = vmatpush.msra.mxu0 0.0
        %421 = vmatpush.msra.mxu0 0.0
        %422 = vmatpush.msra.mxu0 0.0
        %423 = vmatpush.msra.mxu0 %v314
        %424 = vmatpush.msra.mxu0 %v312
        %425 = vmatpush.msra.mxu0 %v310
        %426 = vmatpush.msra.mxu0 %v308
        %427 = vmatpush.msra.mxu0 %v306
        %428 = vmatpush.msra.mxu0 %v304
        %429 = vmatpush.msra.mxu0 %v302
        %430 = vmatpush.msra.mxu0 %v300
        %431 = vmatmul.f32.gmra.mxu0 %v387
        %v432 = vpop.f32.mrf.mxu0
        %v433 = vadd.f32 %v381, %v432
        %434 = vmatmul.f32.gmra.mxu0 %v390
        %v435 = vpop.f32.mrf.mxu0
        %v436 = vadd.f32 %v384, %v435
        %437 = vdwg.mxu0
        %v438 = vld [vmem:[#allocation2 + $0x2] sm:$0xff]
        %v439 = vld [vmem:[#allocation2 + $0xa] sm:$0xff]
        %s440 = scalar_lea.vmem [#allocation4], 256
        %v441 = vld [vmem:[%s440] sm:$0xff]
        %v442 = vld [vmem:[%s440 + $0x8] sm:$0xff]
        %v443 = vld [vmem:[%s440 + $0x10] sm:$0xff]
        %v444 = vld [vmem:[%s440 + $0x18] sm:$0xff]
        %v445 = vld [vmem:[%s440 + $0x20] sm:$0xff]
        %v446 = vld [vmem:[%s440 + $0x28] sm:$0xff]
        %v447 = vld [vmem:[%s440 + $0x30] sm:$0xff]
        %v448 = vld [vmem:[%s440 + $0x38] sm:$0xff]
        %v449 = vld [vmem:[%s440 + $0x40] sm:$0xff]
        %v450 = vld [vmem:[%s440 + $0x48] sm:$0xff]
        %v451 = vld [vmem:[%s440 + $0x50] sm:$0xff]
        %v452 = vld [vmem:[%s440 + $0x58] sm:$0xff]
        %v453 = vld [vmem:[%s440 + $0x60] sm:$0xff]
        %v454 = vld [vmem:[%s440 + $0x68] sm:$0xff]
        %v455 = vld [vmem:[%s440 + $0x70] sm:$0xff]
        %v456 = vld [vmem:[%s440 + $0x78] sm:$0xff]
        %v458 = vsel %vm288, %v438, 0
        %v461 = vsel %vm288, %v439, 0
        %463 = vmatpush.msra.mxu0 0.0
        %464 = vmatpush.msra.mxu0 0.0
        %465 = vmatpush.msra.mxu0 0.0
        %466 = vmatpush.msra.mxu0 0.0
        %467 = vmatpush.msra.mxu0 0.0
        %468 = vmatpush.msra.mxu0 0.0
        %469 = vmatpush.msra.mxu0 0.0
        %470 = vmatpush.msra.mxu0 0.0
        %471 = vmatpush.msra.mxu0 %v455
        %472 = vmatpush.msra.mxu0 %v453
        %473 = vmatpush.msra.mxu0 %v451
        %474 = vmatpush.msra.mxu0 %v449
        %475 = vmatpush.msra.mxu0 %v447
        %476 = vmatpush.msra.mxu0 %v445
        %477 = vmatpush.msra.mxu0 %v443
        %478 = vmatpush.msra.mxu0 %v441
        %479 = vmatmul.f32.gmra.mxu0 %v458
        %v480 = vpop.f32.mrf.mxu0
        %v481 = vadd.f32 0.0, %v480
        %482 = vmatmul.f32.gmra.mxu0 %v461
        %v483 = vpop.f32.mrf.mxu0
        %v484 = vadd.f32 0.0, %v483
        %485 = vdwg.mxu0
        %486 = vmatpush.msra.mxu0 0.0
        %487 = vmatpush.msra.mxu0 0.0
        %488 = vmatpush.msra.mxu0 0.0
        %489 = vmatpush.msra.mxu0 0.0
        %490 = vmatpush.msra.mxu0 0.0
        %491 = vmatpush.msra.mxu0 0.0
        %492 = vmatpush.msra.mxu0 0.0
        %493 = vmatpush.msra.mxu0 0.0
        %494 = vmatpush.msra.mxu0 %v456
        %495 = vmatpush.msra.mxu0 %v454
        %496 = vmatpush.msra.mxu0 %v452
        %497 = vmatpush.msra.mxu0 %v450
        %498 = vmatpush.msra.mxu0 %v448
        %499 = vmatpush.msra.mxu0 %v446
        %500 = vmatpush.msra.mxu0 %v444
        %501 = vmatpush.msra.mxu0 %v442
        %502 = vmatmul.f32.gmra.mxu0 %v458
        %v503 = vpop.f32.mrf.mxu0
        %v504 = vadd.f32 0.0, %v503
        %505 = vmatmul.f32.gmra.mxu0 %v461
        %v506 = vpop.f32.mrf.mxu0
        %v507 = vadd.f32 0.0, %v506
        %508 = vdwg.mxu0
        %v509 = vadd.f32 %v410, %v481
        %v510 = vadd.f32 %v433, %v504
        %v511 = vadd.f32 %v413, %v484
        %v512 = vadd.f32 %v436, %v507
        %v513 = vld [vmem:[#allocation6] sm:$0x3]
        %v515 = vperm.slane %v513, 0
        %v516 = vperm.slane %v513, 1
        %v519 = vadd.f32 %v509, %v515
        %v520 = vadd.f32 %v510, %v516
        %v521 = vadd.f32 %v511, %v515
        %v522 = vadd.f32 %v512, %v516
        %v523 = vmax.f32 %v519, 0.0
        %v524 = vmax.f32 %v520, 0.0
        %v525 = vmax.f32 %v521, 0.0
        %v526 = vmax.f32 %v522, 0.0
        %527 = vst [vmem:[#allocation3] sm:$0xff] 0.0
        %528 = vst [vmem:[#allocation3 + $0x8] sm:$0xff] 0.0
        %529 = vst [vmem:[#allocation3 + $0x10] sm:$0xff] 0.0
        %530 = vst [vmem:[#allocation3 + $0x18] sm:$0xff] 0.0
        %531 = vst [vmem:[#allocation3 + $0x20] sm:$0x3] 0.0
        %532 = vst [vmem:[#allocation3 + $0x28] sm:$0x3] 0.0
        %vm537 = vcmask 1040384
        %v538 = vrot.slane %v523, 7
        %v539 = vrot.slane %v524, 7
        %v540 = vrot.slane %v525, 7
        %v541 = vsel %vm537, %v538, %v540
        %v542 = vrot.slane %v526, 7
        %v543 = vsel %vm537, %v539, %v542
        %550 = vst [vmem:[#allocation3] sm:$0xfe] %v538
        %551 = vst [vmem:[#allocation3 + $0x8] sm:$0xfe] %v539
        %552 = vst [vmem:[#allocation3 + $0x10] sm:$0xff] %v541
        %553 = vst [vmem:[#allocation3 + $0x18] sm:$0xff] %v543
        %554 = vst [vmem:[#allocation3 + $0x20] sm:$0x1] %v540
        %555 = vst [vmem:[#allocation3 + $0x28] sm:$0x1] %v542
        %v556 = vld [vmem:[#allocation3] sm:$0xff]
        %v557 = vld [vmem:[#allocation3 + $0x8] sm:$0xff]
        %v558 = vld [vmem:[#allocation3 + $0x10] sm:$0xff]
        %v559 = vld [vmem:[#allocation3 + $0x18] sm:$0xff]
        %v560 = vld [vmem:[#allocation8] sm:$0xff]
        %v561 = vld [vmem:[#allocation8 + $0x8] sm:$0xff]
        %v562 = vld [vmem:[#allocation8 + $0x10] sm:$0xff]
        %v563 = vld [vmem:[#allocation8 + $0x18] sm:$0xff]
        %v564 = vld [vmem:[#allocation8 + $0x20] sm:$0xff]
        %v565 = vld [vmem:[#allocation8 + $0x28] sm:$0xff]
        %v566 = vld [vmem:[#allocation8 + $0x30] sm:$0xff]
        %v567 = vld [vmem:[#allocation8 + $0x38] sm:$0xff]
        %v568 = vld [vmem:[#allocation8 + $0x40] sm:$0xff]
        %v569 = vld [vmem:[#allocation8 + $0x48] sm:$0xff]
        %v570 = vld [vmem:[#allocation8 + $0x50] sm:$0xff]
        %v571 = vld [vmem:[#allocation8 + $0x58] sm:$0xff]
        %v572 = vld [vmem:[#allocation8 + $0x60] sm:$0xff]
        %v573 = vld [vmem:[#allocation8 + $0x68] sm:$0xff]
        %v574 = vld [vmem:[#allocation8 + $0x70] sm:$0xff]
        %v575 = vld [vmem:[#allocation8 + $0x78] sm:$0xff]
        %v576 = vld [vmem:[#allocation8 + $0x80] sm:$0xff]
        %v577 = vld [vmem:[#allocation8 + $0x88] sm:$0xff]
        %v578 = vld [vmem:[#allocation8 + $0x90] sm:$0xff]
        %v579 = vld [vmem:[#allocation8 + $0x98] sm:$0xff]
        %v580 = vld [vmem:[#allocation8 + $0xa0] sm:$0xff]
        %v581 = vld [vmem:[#allocation8 + $0xa8] sm:$0xff]
        %v582 = vld [vmem:[#allocation8 + $0xb0] sm:$0xff]
        %v583 = vld [vmem:[#allocation8 + $0xb8] sm:$0xff]
        %v584 = vld [vmem:[#allocation8 + $0xc0] sm:$0xff]
        %v585 = vld [vmem:[#allocation8 + $0xc8] sm:$0xff]
        %v586 = vld [vmem:[#allocation8 + $0xd0] sm:$0xff]
        %v587 = vld [vmem:[#allocation8 + $0xd8] sm:$0xff]
        %v588 = vld [vmem:[#allocation8 + $0xe0] sm:$0xff]
        %v589 = vld [vmem:[#allocation8 + $0xe8] sm:$0xff]
        %v590 = vld [vmem:[#allocation8 + $0xf0] sm:$0xff]
        %v591 = vld [vmem:[#allocation8 + $0xf8] sm:$0xff]
        %v592 = vld [vmem:[#allocation8 + $0x100] sm:$0xff]
        %v593 = vld [vmem:[#allocation8 + $0x108] sm:$0xff]
        %v594 = vld [vmem:[#allocation8 + $0x110] sm:$0xff]
        %v595 = vld [vmem:[#allocation8 + $0x118] sm:$0xff]
        %v596 = vld [vmem:[#allocation8 + $0x120] sm:$0xff]
        %v597 = vld [vmem:[#allocation8 + $0x128] sm:$0xff]
        %v598 = vld [vmem:[#allocation8 + $0x130] sm:$0xff]
        %v599 = vld [vmem:[#allocation8 + $0x138] sm:$0xff]
        %v600 = vld [vmem:[#allocation8 + $0x140] sm:$0xff]
        %v601 = vld [vmem:[#allocation8 + $0x148] sm:$0xff]
        %v602 = vld [vmem:[#allocation8 + $0x150] sm:$0xff]
        %v603 = vld [vmem:[#allocation8 + $0x158] sm:$0xff]
        %v604 = vld [vmem:[#allocation8 + $0x160] sm:$0xff]
        %v605 = vld [vmem:[#allocation8 + $0x168] sm:$0xff]
        %v606 = vld [vmem:[#allocation8 + $0x170] sm:$0xff]
        %v607 = vld [vmem:[#allocation8 + $0x178] sm:$0xff]
        %v608 = vld [vmem:[#allocation8 + $0x180] sm:$0xff]
        %v609 = vld [vmem:[#allocation8 + $0x188] sm:$0xff]
        %v610 = vld [vmem:[#allocation8 + $0x190] sm:$0xff]
        %v611 = vld [vmem:[#allocation8 + $0x198] sm:$0xff]
        %v612 = vld [vmem:[#allocation8 + $0x1a0] sm:$0xff]
        %v613 = vld [vmem:[#allocation8 + $0x1a8] sm:$0xff]
        %v614 = vld [vmem:[#allocation8 + $0x1b0] sm:$0xff]
        %v615 = vld [vmem:[#allocation8 + $0x1b8] sm:$0xff]
        %v616 = vld [vmem:[#allocation8 + $0x1c0] sm:$0xff]
        %v617 = vld [vmem:[#allocation8 + $0x1c8] sm:$0xff]
        %v618 = vld [vmem:[#allocation8 + $0x1d0] sm:$0xff]
        %v619 = vld [vmem:[#allocation8 + $0x1d8] sm:$0xff]
        %v620 = vld [vmem:[#allocation8 + $0x1e0] sm:$0xff]
        %v621 = vld [vmem:[#allocation8 + $0x1e8] sm:$0xff]
        %v622 = vld [vmem:[#allocation8 + $0x1f0] sm:$0xff]
        %v623 = vld [vmem:[#allocation8 + $0x1f8] sm:$0xff]
        %v624 = vld [vmem:[#allocation8 + $0x200] sm:$0xff]
        %v625 = vld [vmem:[#allocation8 + $0x208] sm:$0xff]
        %v626 = vld [vmem:[#allocation8 + $0x210] sm:$0xff]
        %v627 = vld [vmem:[#allocation8 + $0x218] sm:$0xff]
        %v628 = vld [vmem:[#allocation8 + $0x220] sm:$0xff]
        %v629 = vld [vmem:[#allocation8 + $0x228] sm:$0xff]
        %v630 = vld [vmem:[#allocation8 + $0x230] sm:$0xff]
        %v631 = vld [vmem:[#allocation8 + $0x238] sm:$0xff]
        %v632 = vld [vmem:[#allocation8 + $0x240] sm:$0xff]
        %v633 = vld [vmem:[#allocation8 + $0x248] sm:$0xff]
        %v634 = vld [vmem:[#allocation8 + $0x250] sm:$0xff]
        %v635 = vld [vmem:[#allocation8 + $0x258] sm:$0xff]
        %v636 = vld [vmem:[#allocation8 + $0x260] sm:$0xff]
        %v637 = vld [vmem:[#allocation8 + $0x268] sm:$0xff]
        %v638 = vld [vmem:[#allocation8 + $0x270] sm:$0xff]
        %v639 = vld [vmem:[#allocation8 + $0x278] sm:$0xff]
        %v640 = vld [vmem:[#allocation8 + $0x280] sm:$0xff]
        %v641 = vld [vmem:[#allocation8 + $0x288] sm:$0xff]
        %v642 = vld [vmem:[#allocation8 + $0x290] sm:$0xff]
        %v643 = vld [vmem:[#allocation8 + $0x298] sm:$0xff]
        %v644 = vld [vmem:[#allocation8 + $0x2a0] sm:$0xff]
        %v645 = vld [vmem:[#allocation8 + $0x2a8] sm:$0xff]
        %v646 = vld [vmem:[#allocation8 + $0x2b0] sm:$0xff]
        %v647 = vld [vmem:[#allocation8 + $0x2b8] sm:$0xff]
        %v648 = vld [vmem:[#allocation8 + $0x2c0] sm:$0xff]
        %v649 = vld [vmem:[#allocation8 + $0x2c8] sm:$0xff]
        %v650 = vld [vmem:[#allocation8 + $0x2d0] sm:$0xff]
        %v651 = vld [vmem:[#allocation8 + $0x2d8] sm:$0xff]
        %v652 = vld [vmem:[#allocation8 + $0x2e0] sm:$0xff]
        %v653 = vld [vmem:[#allocation8 + $0x2e8] sm:$0xff]
        %v654 = vld [vmem:[#allocation8 + $0x2f0] sm:$0xff]
        %v655 = vld [vmem:[#allocation8 + $0x2f8] sm:$0xff]
        %v656 = vld [vmem:[#allocation8 + $0x300] sm:$0xff]
        %v657 = vld [vmem:[#allocation8 + $0x308] sm:$0xff]
        %v658 = vld [vmem:[#allocation8 + $0x310] sm:$0xff]
        %v659 = vld [vmem:[#allocation8 + $0x318] sm:$0xff]
        %v660 = vld [vmem:[#allocation8 + $0x320] sm:$0xff]
        %v661 = vld [vmem:[#allocation8 + $0x328] sm:$0xff]
        %v662 = vld [vmem:[#allocation8 + $0x330] sm:$0xff]
        %v663 = vld [vmem:[#allocation8 + $0x338] sm:$0xff]
        %v664 = vld [vmem:[#allocation8 + $0x340] sm:$0xff]
        %v665 = vld [vmem:[#allocation8 + $0x348] sm:$0xff]
        %v666 = vld [vmem:[#allocation8 + $0x350] sm:$0xff]
        %v667 = vld [vmem:[#allocation8 + $0x358] sm:$0xff]
        %v668 = vld [vmem:[#allocation8 + $0x360] sm:$0xff]
        %v669 = vld [vmem:[#allocation8 + $0x368] sm:$0xff]
        %v670 = vld [vmem:[#allocation8 + $0x370] sm:$0xff]
        %v671 = vld [vmem:[#allocation8 + $0x378] sm:$0xff]
        %v672 = vld [vmem:[#allocation8 + $0x380] sm:$0xff]
        %v673 = vld [vmem:[#allocation8 + $0x388] sm:$0xff]
        %v674 = vld [vmem:[#allocation8 + $0x390] sm:$0xff]
        %v675 = vld [vmem:[#allocation8 + $0x398] sm:$0xff]
        %v676 = vld [vmem:[#allocation8 + $0x3a0] sm:$0xff]
        %v677 = vld [vmem:[#allocation8 + $0x3a8] sm:$0xff]
        %v678 = vld [vmem:[#allocation8 + $0x3b0] sm:$0xff]
        %v679 = vld [vmem:[#allocation8 + $0x3b8] sm:$0xff]
        %v680 = vld [vmem:[#allocation8 + $0x3c0] sm:$0xff]
        %v681 = vld [vmem:[#allocation8 + $0x3c8] sm:$0xff]
        %v682 = vld [vmem:[#allocation8 + $0x3d0] sm:$0xff]
        %v683 = vld [vmem:[#allocation8 + $0x3d8] sm:$0xff]
        %v684 = vld [vmem:[#allocation8 + $0x3e0] sm:$0xff]
        %v685 = vld [vmem:[#allocation8 + $0x3e8] sm:$0xff]
        %v686 = vld [vmem:[#allocation8 + $0x3f0] sm:$0xff]
        %v687 = vld [vmem:[#allocation8 + $0x3f8] sm:$0xff]
        %v688 = vld [vmem:[#allocation3] sm:$0xfe]
        %v689 = vld [vmem:[#allocation3 + $0x8] sm:$0xfe]
        %v690 = vld [vmem:[#allocation3 + $0x20] sm:$0x1]
        %v691 = vld [vmem:[#allocation3 + $0x28] sm:$0x1]
        %s692 = scalar_lea.vmem [#allocation8], 1024
        %v693 = vld [vmem:[%s692] sm:$0xff]
        %v694 = vld [vmem:[%s692 + $0x8] sm:$0xff]
        %v695 = vld [vmem:[%s692 + $0x10] sm:$0xff]
        %v696 = vld [vmem:[%s692 + $0x18] sm:$0xff]
        %v697 = vld [vmem:[%s692 + $0x20] sm:$0xff]
        %v698 = vld [vmem:[%s692 + $0x28] sm:$0xff]
        %v699 = vld [vmem:[%s692 + $0x30] sm:$0xff]
        %v700 = vld [vmem:[%s692 + $0x38] sm:$0xff]
        %v701 = vld [vmem:[%s692 + $0x40] sm:$0xff]
        %v702 = vld [vmem:[%s692 + $0x48] sm:$0xff]
        %v703 = vld [vmem:[%s692 + $0x50] sm:$0xff]
        %v704 = vld [vmem:[%s692 + $0x58] sm:$0xff]
        %v705 = vld [vmem:[%s692 + $0x60] sm:$0xff]
        %v706 = vld [vmem:[%s692 + $0x68] sm:$0xff]
        %v707 = vld [vmem:[%s692 + $0x70] sm:$0xff]
        %v708 = vld [vmem:[%s692 + $0x78] sm:$0xff]
        %v709 = vld [vmem:[%s692 + $0x80] sm:$0xff]
        %v710 = vld [vmem:[%s692 + $0x88] sm:$0xff]
        %v711 = vld [vmem:[%s692 + $0x90] sm:$0xff]
        %v712 = vld [vmem:[%s692 + $0x98] sm:$0xff]
        %v713 = vld [vmem:[%s692 + $0xa0] sm:$0xff]
        %v714 = vld [vmem:[%s692 + $0xa8] sm:$0xff]
        %v715 = vld [vmem:[%s692 + $0xb0] sm:$0xff]
        %v716 = vld [vmem:[%s692 + $0xb8] sm:$0xff]
        %v717 = vld [vmem:[%s692 + $0xc0] sm:$0xff]
        %v718 = vld [vmem:[%s692 + $0xc8] sm:$0xff]
        %v719 = vld [vmem:[%s692 + $0xd0] sm:$0xff]
        %v720 = vld [vmem:[%s692 + $0xd8] sm:$0xff]
        %v721 = vld [vmem:[%s692 + $0xe0] sm:$0xff]
        %v722 = vld [vmem:[%s692 + $0xe8] sm:$0xff]
        %v723 = vld [vmem:[%s692 + $0xf0] sm:$0xff]
        %v724 = vld [vmem:[%s692 + $0xf8] sm:$0xff]
        %v725 = vld [vmem:[%s692 + $0x100] sm:$0xff]
        %v726 = vld [vmem:[%s692 + $0x108] sm:$0xff]
        %v727 = vld [vmem:[%s692 + $0x110] sm:$0xff]
        %v728 = vld [vmem:[%s692 + $0x118] sm:$0xff]
        %v729 = vld [vmem:[%s692 + $0x120] sm:$0xff]
        %v730 = vld [vmem:[%s692 + $0x128] sm:$0xff]
        %v731 = vld [vmem:[%s692 + $0x130] sm:$0xff]
        %v732 = vld [vmem:[%s692 + $0x138] sm:$0xff]
        %v733 = vld [vmem:[%s692 + $0x140] sm:$0xff]
        %v734 = vld [vmem:[%s692 + $0x148] sm:$0xff]
        %v735 = vld [vmem:[%s692 + $0x150] sm:$0xff]
        %v736 = vld [vmem:[%s692 + $0x158] sm:$0xff]
        %v737 = vld [vmem:[%s692 + $0x160] sm:$0xff]
        %v738 = vld [vmem:[%s692 + $0x168] sm:$0xff]
        %v739 = vld [vmem:[%s692 + $0x170] sm:$0xff]
        %v740 = vld [vmem:[%s692 + $0x178] sm:$0xff]
        %v741 = vld [vmem:[%s692 + $0x180] sm:$0xff]
        %v742 = vld [vmem:[%s692 + $0x188] sm:$0xff]
        %v743 = vld [vmem:[%s692 + $0x190] sm:$0xff]
        %v744 = vld [vmem:[%s692 + $0x198] sm:$0xff]
        %v745 = vld [vmem:[%s692 + $0x1a0] sm:$0xff]
        %v746 = vld [vmem:[%s692 + $0x1a8] sm:$0xff]
        %v747 = vld [vmem:[%s692 + $0x1b0] sm:$0xff]
        %v748 = vld [vmem:[%s692 + $0x1b8] sm:$0xff]
        %v749 = vld [vmem:[%s692 + $0x1c0] sm:$0xff]
        %v750 = vld [vmem:[%s692 + $0x1c8] sm:$0xff]
        %v751 = vld [vmem:[%s692 + $0x1d0] sm:$0xff]
        %v752 = vld [vmem:[%s692 + $0x1d8] sm:$0xff]
        %v753 = vld [vmem:[%s692 + $0x1e0] sm:$0xff]
        %v754 = vld [vmem:[%s692 + $0x1e8] sm:$0xff]
        %v755 = vld [vmem:[%s692 + $0x1f0] sm:$0xff]
        %v756 = vld [vmem:[%s692 + $0x1f8] sm:$0xff]
        %v757 = vld [vmem:[%s692 + $0x200] sm:$0xff]
        %v758 = vld [vmem:[%s692 + $0x208] sm:$0xff]
        %v759 = vld [vmem:[%s692 + $0x210] sm:$0xff]
        %v760 = vld [vmem:[%s692 + $0x218] sm:$0xff]
        %v761 = vld [vmem:[%s692 + $0x220] sm:$0xff]
        %v762 = vld [vmem:[%s692 + $0x228] sm:$0xff]
        %v763 = vld [vmem:[%s692 + $0x230] sm:$0xff]
        %v764 = vld [vmem:[%s692 + $0x238] sm:$0xff]
        %v765 = vld [vmem:[%s692 + $0x240] sm:$0xff]
        %v766 = vld [vmem:[%s692 + $0x248] sm:$0xff]
        %v767 = vld [vmem:[%s692 + $0x250] sm:$0xff]
        %v768 = vld [vmem:[%s692 + $0x258] sm:$0xff]
        %v769 = vld [vmem:[%s692 + $0x260] sm:$0xff]
        %v770 = vld [vmem:[%s692 + $0x268] sm:$0xff]
        %v771 = vld [vmem:[%s692 + $0x270] sm:$0xff]
        %v772 = vld [vmem:[%s692 + $0x278] sm:$0xff]
        %v773 = vld [vmem:[%s692 + $0x280] sm:$0xff]
        %v774 = vld [vmem:[%s692 + $0x288] sm:$0xff]
        %v775 = vld [vmem:[%s692 + $0x290] sm:$0xff]
        %v776 = vld [vmem:[%s692 + $0x298] sm:$0xff]
        %v777 = vld [vmem:[%s692 + $0x2a0] sm:$0xff]
        %v778 = vld [vmem:[%s692 + $0x2a8] sm:$0xff]
        %v779 = vld [vmem:[%s692 + $0x2b0] sm:$0xff]
        %v780 = vld [vmem:[%s692 + $0x2b8] sm:$0xff]
        %v781 = vld [vmem:[%s692 + $0x2c0] sm:$0xff]
        %v782 = vld [vmem:[%s692 + $0x2c8] sm:$0xff]
        %v783 = vld [vmem:[%s692 + $0x2d0] sm:$0xff]
        %v784 = vld [vmem:[%s692 + $0x2d8] sm:$0xff]
        %v785 = vld [vmem:[%s692 + $0x2e0] sm:$0xff]
        %v786 = vld [vmem:[%s692 + $0x2e8] sm:$0xff]
        %v787 = vld [vmem:[%s692 + $0x2f0] sm:$0xff]
        %v788 = vld [vmem:[%s692 + $0x2f8] sm:$0xff]
        %v789 = vld [vmem:[%s692 + $0x300] sm:$0xff]
        %v790 = vld [vmem:[%s692 + $0x308] sm:$0xff]
        %v791 = vld [vmem:[%s692 + $0x310] sm:$0xff]
        %v792 = vld [vmem:[%s692 + $0x318] sm:$0xff]
        %v793 = vld [vmem:[%s692 + $0x320] sm:$0xff]
        %v794 = vld [vmem:[%s692 + $0x328] sm:$0xff]
        %v795 = vld [vmem:[%s692 + $0x330] sm:$0xff]
        %v796 = vld [vmem:[%s692 + $0x338] sm:$0xff]
        %v797 = vld [vmem:[%s692 + $0x340] sm:$0xff]
        %v798 = vld [vmem:[%s692 + $0x348] sm:$0xff]
        %v799 = vld [vmem:[%s692 + $0x350] sm:$0xff]
        %v800 = vld [vmem:[%s692 + $0x358] sm:$0xff]
        %v801 = vld [vmem:[%s692 + $0x360] sm:$0xff]
        %v802 = vld [vmem:[%s692 + $0x368] sm:$0xff]
        %v803 = vld [vmem:[%s692 + $0x370] sm:$0xff]
        %v804 = vld [vmem:[%s692 + $0x378] sm:$0xff]
        %v805 = vld [vmem:[%s692 + $0x380] sm:$0xff]
        %v806 = vld [vmem:[%s692 + $0x388] sm:$0xff]
        %v807 = vld [vmem:[%s692 + $0x390] sm:$0xff]
        %v808 = vld [vmem:[%s692 + $0x398] sm:$0xff]
        %v809 = vld [vmem:[%s692 + $0x3a0] sm:$0xff]
        %v810 = vld [vmem:[%s692 + $0x3a8] sm:$0xff]
        %v811 = vld [vmem:[%s692 + $0x3b0] sm:$0xff]
        %v812 = vld [vmem:[%s692 + $0x3b8] sm:$0xff]
        %v813 = vld [vmem:[%s692 + $0x3c0] sm:$0xff]
        %v814 = vld [vmem:[%s692 + $0x3c8] sm:$0xff]
        %v815 = vld [vmem:[%s692 + $0x3d0] sm:$0xff]
        %v816 = vld [vmem:[%s692 + $0x3d8] sm:$0xff]
        %v817 = vld [vmem:[%s692 + $0x3e0] sm:$0xff]
        %v818 = vld [vmem:[%s692 + $0x3e8] sm:$0xff]
        %v819 = vld [vmem:[%s692 + $0x3f0] sm:$0xff]
        %v820 = vld [vmem:[%s692 + $0x3f8] sm:$0xff]
        %vm827 = vcmask 1046528
        %v828 = vrot.slane %v688, 1
        %v829 = vrot.slane %v558, 1
        %v830 = vsel %vm827, %v828, %v829
        %v831 = vrot.slane %v689, 1
        %v832 = vrot.slane %v559, 1
        %v833 = vsel %vm827, %v831, %v832
        %v834 = vrot.slane %v690, 1
        %v835 = vsel %vm827, %v829, %v834
        %v836 = vrot.slane %v691, 1
        %v837 = vsel %vm827, %v832, %v836
        %842 = vmatpush.msra.mxu0 %v753
        %843 = vmatpush.msra.mxu0 %v749
        %844 = vmatpush.msra.mxu0 %v745
        %845 = vmatpush.msra.mxu0 %v741
        %846 = vmatpush.msra.mxu0 %v737
        %847 = vmatpush.msra.mxu0 %v733
        %848 = vmatpush.msra.mxu0 %v729
        %849 = vmatpush.msra.mxu0 %v725
        %850 = vmatpush.msra.mxu0 %v721
        %851 = vmatpush.msra.mxu0 %v717
        %852 = vmatpush.msra.mxu0 %v713
        %853 = vmatpush.msra.mxu0 %v709
        %854 = vmatpush.msra.mxu0 %v705
        %855 = vmatpush.msra.mxu0 %v701
        %856 = vmatpush.msra.mxu0 %v697
        %857 = vmatpush.msra.mxu0 %v693
        %858 = vmatmul.f32.gmra.mxu0 %v830
        %v859 = vpop.f32.mrf.mxu0
        %v860 = vadd.f32 0.0, %v859
        %861 = vmatmul.f32.gmra.mxu0 %v835
        %v862 = vpop.f32.mrf.mxu0
        %v863 = vadd.f32 0.0, %v862
        %864 = vdwg.mxu0
        %865 = vmatpush.msra.mxu0 %v817
        %866 = vmatpush.msra.mxu0 %v813
        %867 = vmatpush.msra.mxu0 %v809
        %868 = vmatpush.msra.mxu0 %v805
        %869 = vmatpush.msra.mxu0 %v801
        %870 = vmatpush.msra.mxu0 %v797
        %871 = vmatpush.msra.mxu0 %v793
        %872 = vmatpush.msra.mxu0 %v789
        %873 = vmatpush.msra.mxu0 %v785
        %874 = vmatpush.msra.mxu0 %v781
        %875 = vmatpush.msra.mxu0 %v777
        %876 = vmatpush.msra.mxu0 %v773
        %877 = vmatpush.msra.mxu0 %v769
        %878 = vmatpush.msra.mxu0 %v765
        %879 = vmatpush.msra.mxu0 %v761
        %880 = vmatpush.msra.mxu0 %v757
        %881 = vmatmul.f32.gmra.mxu0 %v833
        %v882 = vpop.f32.mrf.mxu0
        %v883 = vadd.f32 %v860, %v882
        %884 = vmatmul.f32.gmra.mxu0 %v837
        %v885 = vpop.f32.mrf.mxu0
        %v886 = vadd.f32 %v863, %v885
        %887 = vdwg.mxu0
        %888 = vmatpush.msra.mxu0 %v754
        %889 = vmatpush.msra.mxu0 %v750
        %890 = vmatpush.msra.mxu0 %v746
        %891 = vmatpush.msra.mxu0 %v742
        %892 = vmatpush.msra.mxu0 %v738
        %893 = vmatpush.msra.mxu0 %v734
        %894 = vmatpush.msra.mxu0 %v730
        %895 = vmatpush.msra.mxu0 %v726
        %896 = vmatpush.msra.mxu0 %v722
        %897 = vmatpush.msra.mxu0 %v718
        %898 = vmatpush.msra.mxu0 %v714
        %899 = vmatpush.msra.mxu0 %v710
        %900 = vmatpush.msra.mxu0 %v706
        %901 = vmatpush.msra.mxu0 %v702
        %902 = vmatpush.msra.mxu0 %v698
        %903 = vmatpush.msra.mxu0 %v694
        %904 = vmatmul.f32.gmra.mxu0 %v830
        %v905 = vpop.f32.mrf.mxu0
        %v906 = vadd.f32 0.0, %v905
        %907 = vmatmul.f32.gmra.mxu0 %v835
        %v908 = vpop.f32.mrf.mxu0
        %v909 = vadd.f32 0.0, %v908
        %910 = vdwg.mxu0
        %911 = vmatpush.msra.mxu0 %v818
        %912 = vmatpush.msra.mxu0 %v814
        %913 = vmatpush.msra.mxu0 %v810
        %914 = vmatpush.msra.mxu0 %v806
        %915 = vmatpush.msra.mxu0 %v802
        %916 = vmatpush.msra.mxu0 %v798
        %917 = vmatpush.msra.mxu0 %v794
        %918 = vmatpush.msra.mxu0 %v790
        %919 = vmatpush.msra.mxu0 %v786
        %920 = vmatpush.msra.mxu0 %v782
        %921 = vmatpush.msra.mxu0 %v778
        %922 = vmatpush.msra.mxu0 %v774
        %923 = vmatpush.msra.mxu0 %v770
        %924 = vmatpush.msra.mxu0 %v766
        %925 = vmatpush.msra.mxu0 %v762
        %926 = vmatpush.msra.mxu0 %v758
        %927 = vmatmul.f32.gmra.mxu0 %v833
        %v928 = vpop.f32.mrf.mxu0
        %v929 = vadd.f32 %v906, %v928
        %930 = vmatmul.f32.gmra.mxu0 %v837
        %v931 = vpop.f32.mrf.mxu0
        %v932 = vadd.f32 %v909, %v931
        %933 = vdwg.mxu0
        %934 = vmatpush.msra.mxu0 %v755
        %935 = vmatpush.msra.mxu0 %v751
        %936 = vmatpush.msra.mxu0 %v747
        %937 = vmatpush.msra.mxu0 %v743
        %938 = vmatpush.msra.mxu0 %v739
        %939 = vmatpush.msra.mxu0 %v735
        %940 = vmatpush.msra.mxu0 %v731
        %941 = vmatpush.msra.mxu0 %v727
        %942 = vmatpush.msra.mxu0 %v723
        %943 = vmatpush.msra.mxu0 %v719
        %944 = vmatpush.msra.mxu0 %v715
        %945 = vmatpush.msra.mxu0 %v711
        %946 = vmatpush.msra.mxu0 %v707
        %947 = vmatpush.msra.mxu0 %v703
        %948 = vmatpush.msra.mxu0 %v699
        %949 = vmatpush.msra.mxu0 %v695
        %950 = vmatmul.f32.gmra.mxu0 %v830
        %v951 = vpop.f32.mrf.mxu0
        %v952 = vadd.f32 0.0, %v951
        %953 = vmatmul.f32.gmra.mxu0 %v835
        %v954 = vpop.f32.mrf.mxu0
        %v955 = vadd.f32 0.0, %v954
        %956 = vdwg.mxu0
        %957 = vmatpush.msra.mxu0 %v819
        %958 = vmatpush.msra.mxu0 %v815
        %959 = vmatpush.msra.mxu0 %v811
        %960 = vmatpush.msra.mxu0 %v807
        %961 = vmatpush.msra.mxu0 %v803
        %962 = vmatpush.msra.mxu0 %v799
        %963 = vmatpush.msra.mxu0 %v795
        %964 = vmatpush.msra.mxu0 %v791
        %965 = vmatpush.msra.mxu0 %v787
        %966 = vmatpush.msra.mxu0 %v783
        %967 = vmatpush.msra.mxu0 %v779
        %968 = vmatpush.msra.mxu0 %v775
        %969 = vmatpush.msra.mxu0 %v771
        %970 = vmatpush.msra.mxu0 %v767
        %971 = vmatpush.msra.mxu0 %v763
        %972 = vmatpush.msra.mxu0 %v759
        %973 = vmatmul.f32.gmra.mxu0 %v833
        %v974 = vpop.f32.mrf.mxu0
        %v975 = vadd.f32 %v952, %v974
        %976 = vmatmul.f32.gmra.mxu0 %v837
        %v977 = vpop.f32.mrf.mxu0
        %v978 = vadd.f32 %v955, %v977
        %979 = vdwg.mxu0
        %980 = vmatpush.msra.mxu0 %v756
        %981 = vmatpush.msra.mxu0 %v752
        %982 = vmatpush.msra.mxu0 %v748
        %983 = vmatpush.msra.mxu0 %v744
        %984 = vmatpush.msra.mxu0 %v740
        %985 = vmatpush.msra.mxu0 %v736
        %986 = vmatpush.msra.mxu0 %v732
        %987 = vmatpush.msra.mxu0 %v728
        %988 = vmatpush.msra.mxu0 %v724
        %989 = vmatpush.msra.mxu0 %v720
        %990 = vmatpush.msra.mxu0 %v716
        %991 = vmatpush.msra.mxu0 %v712
        %992 = vmatpush.msra.mxu0 %v708
        %993 = vmatpush.msra.mxu0 %v704
        %994 = vmatpush.msra.mxu0 %v700
        %995 = vmatpush.msra.mxu0 %v696
        %996 = vmatmul.f32.gmra.mxu0 %v830
        %v997 = vpop.f32.mrf.mxu0
        %v998 = vadd.f32 0.0, %v997
        %999 = vmatmul.f32.gmra.mxu0 %v835
        %v1000 = vpop.f32.mrf.mxu0
        %v1001 = vadd.f32 0.0, %v1000
        %1002 = vdwg.mxu0
        %1003 = vmatpush.msra.mxu0 %v820
        %1004 = vmatpush.msra.mxu0 %v816
        %1005 = vmatpush.msra.mxu0 %v812
        %1006 = vmatpush.msra.mxu0 %v808
        %1007 = vmatpush.msra.mxu0 %v804
        %1008 = vmatpush.msra.mxu0 %v800
        %1009 = vmatpush.msra.mxu0 %v796
        %1010 = vmatpush.msra.mxu0 %v792
        %1011 = vmatpush.msra.mxu0 %v788
        %1012 = vmatpush.msra.mxu0 %v784
        %1013 = vmatpush.msra.mxu0 %v780
        %1014 = vmatpush.msra.mxu0 %v776
        %1015 = vmatpush.msra.mxu0 %v772
        %1016 = vmatpush.msra.mxu0 %v768
        %1017 = vmatpush.msra.mxu0 %v764
        %1018 = vmatpush.msra.mxu0 %v760
        %1019 = vmatmul.f32.gmra.mxu0 %v833
        %v1020 = vpop.f32.mrf.mxu0
        %v1021 = vadd.f32 %v998, %v1020
        %1022 = vmatmul.f32.gmra.mxu0 %v837
        %v1023 = vpop.f32.mrf.mxu0
        %v1024 = vadd.f32 %v1001, %v1023
        %1025 = vdwg.mxu0
        %1026 = vmatpush.msra.mxu0 %v620
        %1027 = vmatpush.msra.mxu0 %v616
        %1028 = vmatpush.msra.mxu0 %v612
        %1029 = vmatpush.msra.mxu0 %v608
        %1030 = vmatpush.msra.mxu0 %v604
        %1031 = vmatpush.msra.mxu0 %v600
        %1032 = vmatpush.msra.mxu0 %v596
        %1033 = vmatpush.msra.mxu0 %v592
        %1034 = vmatpush.msra.mxu0 %v588
        %1035 = vmatpush.msra.mxu0 %v584
        %1036 = vmatpush.msra.mxu0 %v580
        %1037 = vmatpush.msra.mxu0 %v576
        %1038 = vmatpush.msra.mxu0 %v572
        %1039 = vmatpush.msra.mxu0 %v568
        %1040 = vmatpush.msra.mxu0 %v564
        %1041 = vmatpush.msra.mxu0 %v560
        %1042 = vmatmul.f32.gmra.mxu0 %v556
        %v1043 = vpop.f32.mrf.mxu0
        %v1044 = vadd.f32 %v883, %v1043
        %1045 = vmatmul.f32.gmra.mxu0 %v558
        %v1046 = vpop.f32.mrf.mxu0
        %v1047 = vadd.f32 %v886, %v1046
        %1048 = vdwg.mxu0
        %1049 = vmatpush.msra.mxu0 %v684
        %1050 = vmatpush.msra.mxu0 %v680
        %1051 = vmatpush.msra.mxu0 %v676
        %1052 = vmatpush.msra.mxu0 %v672
        %1053 = vmatpush.msra.mxu0 %v668
        %1054 = vmatpush.msra.mxu0 %v664
        %1055 = vmatpush.msra.mxu0 %v660
        %1056 = vmatpush.msra.mxu0 %v656
        %1057 = vmatpush.msra.mxu0 %v652
        %1058 = vmatpush.msra.mxu0 %v648
        %1059 = vmatpush.msra.mxu0 %v644
        %1060 = vmatpush.msra.mxu0 %v640
        %1061 = vmatpush.msra.mxu0 %v636
        %1062 = vmatpush.msra.mxu0 %v632
        %1063 = vmatpush.msra.mxu0 %v628
        %1064 = vmatpush.msra.mxu0 %v624
        %1065 = vmatmul.f32.gmra.mxu0 %v557
        %v1066 = vpop.f32.mrf.mxu0
        %v1067 = vadd.f32 %v1044, %v1066
        %1068 = vmatmul.f32.gmra.mxu0 %v559
        %v1069 = vpop.f32.mrf.mxu0
        %v1070 = vadd.f32 %v1047, %v1069
        %1071 = vdwg.mxu0
        %1072 = vmatpush.msra.mxu0 %v621
        %1073 = vmatpush.msra.mxu0 %v617
        %1074 = vmatpush.msra.mxu0 %v613
        %1075 = vmatpush.msra.mxu0 %v609
        %1076 = vmatpush.msra.mxu0 %v605
        %1077 = vmatpush.msra.mxu0 %v601
        %1078 = vmatpush.msra.mxu0 %v597
        %1079 = vmatpush.msra.mxu0 %v593
        %1080 = vmatpush.msra.mxu0 %v589
        %1081 = vmatpush.msra.mxu0 %v585
        %1082 = vmatpush.msra.mxu0 %v581
        %1083 = vmatpush.msra.mxu0 %v577
        %1084 = vmatpush.msra.mxu0 %v573
        %1085 = vmatpush.msra.mxu0 %v569
        %1086 = vmatpush.msra.mxu0 %v565
        %1087 = vmatpush.msra.mxu0 %v561
        %1088 = vmatmul.f32.gmra.mxu0 %v556
        %v1089 = vpop.f32.mrf.mxu0
        %v1090 = vadd.f32 %v929, %v1089
        %1091 = vmatmul.f32.gmra.mxu0 %v558
        %v1092 = vpop.f32.mrf.mxu0
        %v1093 = vadd.f32 %v932, %v1092
        %1094 = vdwg.mxu0
        %1095 = vmatpush.msra.mxu0 %v685
        %1096 = vmatpush.msra.mxu0 %v681
        %1097 = vmatpush.msra.mxu0 %v677
        %1098 = vmatpush.msra.mxu0 %v673
        %1099 = vmatpush.msra.mxu0 %v669
        %1100 = vmatpush.msra.mxu0 %v665
        %1101 = vmatpush.msra.mxu0 %v661
        %1102 = vmatpush.msra.mxu0 %v657
        %1103 = vmatpush.msra.mxu0 %v653
        %1104 = vmatpush.msra.mxu0 %v649
        %1105 = vmatpush.msra.mxu0 %v645
        %1106 = vmatpush.msra.mxu0 %v641
        %1107 = vmatpush.msra.mxu0 %v637
        %1108 = vmatpush.msra.mxu0 %v633
        %1109 = vmatpush.msra.mxu0 %v629
        %1110 = vmatpush.msra.mxu0 %v625
        %1111 = vmatmul.f32.gmra.mxu0 %v557
        %v1112 = vpop.f32.mrf.mxu0
        %v1113 = vadd.f32 %v1090, %v1112
        %1114 = vmatmul.f32.gmra.mxu0 %v559
        %v1115 = vpop.f32.mrf.mxu0
        %v1116 = vadd.f32 %v1093, %v1115
        %1117 = vdwg.mxu0
        %1118 = vmatpush.msra.mxu0 %v622
        %1119 = vmatpush.msra.mxu0 %v618
        %1120 = vmatpush.msra.mxu0 %v614
        %1121 = vmatpush.msra.mxu0 %v610
        %1122 = vmatpush.msra.mxu0 %v606
        %1123 = vmatpush.msra.mxu0 %v602
        %1124 = vmatpush.msra.mxu0 %v598
        %1125 = vmatpush.msra.mxu0 %v594
        %1126 = vmatpush.msra.mxu0 %v590
        %1127 = vmatpush.msra.mxu0 %v586
        %1128 = vmatpush.msra.mxu0 %v582
        %1129 = vmatpush.msra.mxu0 %v578
        %1130 = vmatpush.msra.mxu0 %v574
        %1131 = vmatpush.msra.mxu0 %v570
        %1132 = vmatpush.msra.mxu0 %v566
        %1133 = vmatpush.msra.mxu0 %v562
        %1134 = vmatmul.f32.gmra.mxu0 %v556
        %v1135 = vpop.f32.mrf.mxu0
        %v1136 = vadd.f32 %v975, %v1135
        %1137 = vmatmul.f32.gmra.mxu0 %v558
        %v1138 = vpop.f32.mrf.mxu0
        %v1139 = vadd.f32 %v978, %v1138
        %1140 = vdwg.mxu0
        %1141 = vmatpush.msra.mxu0 %v686
        %1142 = vmatpush.msra.mxu0 %v682
        %1143 = vmatpush.msra.mxu0 %v678
        %1144 = vmatpush.msra.mxu0 %v674
        %1145 = vmatpush.msra.mxu0 %v670
        %1146 = vmatpush.msra.mxu0 %v666
        %1147 = vmatpush.msra.mxu0 %v662
        %1148 = vmatpush.msra.mxu0 %v658
        %1149 = vmatpush.msra.mxu0 %v654
        %1150 = vmatpush.msra.mxu0 %v650
        %1151 = vmatpush.msra.mxu0 %v646
        %1152 = vmatpush.msra.mxu0 %v642
        %1153 = vmatpush.msra.mxu0 %v638
        %1154 = vmatpush.msra.mxu0 %v634
        %1155 = vmatpush.msra.mxu0 %v630
        %1156 = vmatpush.msra.mxu0 %v626
        %1157 = vmatmul.f32.gmra.mxu0 %v557
        %v1158 = vpop.f32.mrf.mxu0
        %v1159 = vadd.f32 %v1136, %v1158
        %1160 = vmatmul.f32.gmra.mxu0 %v559
        %v1161 = vpop.f32.mrf.mxu0
        %v1162 = vadd.f32 %v1139, %v1161
        %1163 = vdwg.mxu0
        %1164 = vmatpush.msra.mxu0 %v623
        %1165 = vmatpush.msra.mxu0 %v619
        %1166 = vmatpush.msra.mxu0 %v615
        %1167 = vmatpush.msra.mxu0 %v611
        %1168 = vmatpush.msra.mxu0 %v607
        %1169 = vmatpush.msra.mxu0 %v603
        %1170 = vmatpush.msra.mxu0 %v599
        %1171 = vmatpush.msra.mxu0 %v595
        %1172 = vmatpush.msra.mxu0 %v591
        %1173 = vmatpush.msra.mxu0 %v587
        %1174 = vmatpush.msra.mxu0 %v583
        %1175 = vmatpush.msra.mxu0 %v579
        %1176 = vmatpush.msra.mxu0 %v575
        %1177 = vmatpush.msra.mxu0 %v571
        %1178 = vmatpush.msra.mxu0 %v567
        %1179 = vmatpush.msra.mxu0 %v563
        %1180 = vmatmul.f32.gmra.mxu0 %v556
        %v1181 = vpop.f32.mrf.mxu0
        %v1182 = vadd.f32 %v1021, %v1181
        %1183 = vmatmul.f32.gmra.mxu0 %v558
        %v1184 = vpop.f32.mrf.mxu0
        %v1185 = vadd.f32 %v1024, %v1184
        %1186 = vdwg.mxu0
        %1187 = vmatpush.msra.mxu0 %v687
        %1188 = vmatpush.msra.mxu0 %v683
        %1189 = vmatpush.msra.mxu0 %v679
        %1190 = vmatpush.msra.mxu0 %v675
        %1191 = vmatpush.msra.mxu0 %v671
        %1192 = vmatpush.msra.mxu0 %v667
        %1193 = vmatpush.msra.mxu0 %v663
        %1194 = vmatpush.msra.mxu0 %v659
        %1195 = vmatpush.msra.mxu0 %v655
        %1196 = vmatpush.msra.mxu0 %v651
        %1197 = vmatpush.msra.mxu0 %v647
        %1198 = vmatpush.msra.mxu0 %v643
        %1199 = vmatpush.msra.mxu0 %v639
        %1200 = vmatpush.msra.mxu0 %v635
        %1201 = vmatpush.msra.mxu0 %v631
        %1202 = vmatpush.msra.mxu0 %v627
        %1203 = vmatmul.f32.gmra.mxu0 %v557
        %v1204 = vpop.f32.mrf.mxu0
        %v1205 = vadd.f32 %v1182, %v1204
        %1206 = vmatmul.f32.gmra.mxu0 %v559
        %v1207 = vpop.f32.mrf.mxu0
        %v1208 = vadd.f32 %v1185, %v1207
        %1209 = vdwg.mxu0
        %v1210 = vld [vmem:[#allocation3] sm:$0xfc]
        %v1211 = vld [vmem:[#allocation3 + $0x8] sm:$0xfc]
        %v1212 = vld [vmem:[#allocation3 + $0x20] sm:$0x3]
        %v1213 = vld [vmem:[#allocation3 + $0x28] sm:$0x3]
        %s1214 = scalar_lea.vmem [#allocation8], 2048
        %v1215 = vld [vmem:[%s1214] sm:$0xff]
        %v1216 = vld [vmem:[%s1214 + $0x8] sm:$0xff]
        %v1217 = vld [vmem:[%s1214 + $0x10] sm:$0xff]
        %v1218 = vld [vmem:[%s1214 + $0x18] sm:$0xff]
        %v1219 = vld [vmem:[%s1214 + $0x20] sm:$0xff]
        %v1220 = vld [vmem:[%s1214 + $0x28] sm:$0xff]
        %v1221 = vld [vmem:[%s1214 + $0x30] sm:$0xff]
        %v1222 = vld [vmem:[%s1214 + $0x38] sm:$0xff]
        %v1223 = vld [vmem:[%s1214 + $0x40] sm:$0xff]
        %v1224 = vld [vmem:[%s1214 + $0x48] sm:$0xff]
        %v1225 = vld [vmem:[%s1214 + $0x50] sm:$0xff]
        %v1226 = vld [vmem:[%s1214 + $0x58] sm:$0xff]
        %v1227 = vld [vmem:[%s1214 + $0x60] sm:$0xff]
        %v1228 = vld [vmem:[%s1214 + $0x68] sm:$0xff]
        %v1229 = vld [vmem:[%s1214 + $0x70] sm:$0xff]
        %v1230 = vld [vmem:[%s1214 + $0x78] sm:$0xff]
        %v1231 = vld [vmem:[%s1214 + $0x80] sm:$0xff]
        %v1232 = vld [vmem:[%s1214 + $0x88] sm:$0xff]
        %v1233 = vld [vmem:[%s1214 + $0x90] sm:$0xff]
        %v1234 = vld [vmem:[%s1214 + $0x98] sm:$0xff]
        %v1235 = vld [vmem:[%s1214 + $0xa0] sm:$0xff]
        %v1236 = vld [vmem:[%s1214 + $0xa8] sm:$0xff]
        %v1237 = vld [vmem:[%s1214 + $0xb0] sm:$0xff]
        %v1238 = vld [vmem:[%s1214 + $0xb8] sm:$0xff]
        %v1239 = vld [vmem:[%s1214 + $0xc0] sm:$0xff]
        %v1240 = vld [vmem:[%s1214 + $0xc8] sm:$0xff]
        %v1241 = vld [vmem:[%s1214 + $0xd0] sm:$0xff]
        %v1242 = vld [vmem:[%s1214 + $0xd8] sm:$0xff]
        %v1243 = vld [vmem:[%s1214 + $0xe0] sm:$0xff]
        %v1244 = vld [vmem:[%s1214 + $0xe8] sm:$0xff]
        %v1245 = vld [vmem:[%s1214 + $0xf0] sm:$0xff]
        %v1246 = vld [vmem:[%s1214 + $0xf8] sm:$0xff]
        %v1247 = vld [vmem:[%s1214 + $0x100] sm:$0xff]
        %v1248 = vld [vmem:[%s1214 + $0x108] sm:$0xff]
        %v1249 = vld [vmem:[%s1214 + $0x110] sm:$0xff]
        %v1250 = vld [vmem:[%s1214 + $0x118] sm:$0xff]
        %v1251 = vld [vmem:[%s1214 + $0x120] sm:$0xff]
        %v1252 = vld [vmem:[%s1214 + $0x128] sm:$0xff]
        %v1253 = vld [vmem:[%s1214 + $0x130] sm:$0xff]
        %v1254 = vld [vmem:[%s1214 + $0x138] sm:$0xff]
        %v1255 = vld [vmem:[%s1214 + $0x140] sm:$0xff]
        %v1256 = vld [vmem:[%s1214 + $0x148] sm:$0xff]
        %v1257 = vld [vmem:[%s1214 + $0x150] sm:$0xff]
        %v1258 = vld [vmem:[%s1214 + $0x158] sm:$0xff]
        %v1259 = vld [vmem:[%s1214 + $0x160] sm:$0xff]
        %v1260 = vld [vmem:[%s1214 + $0x168] sm:$0xff]
        %v1261 = vld [vmem:[%s1214 + $0x170] sm:$0xff]
        %v1262 = vld [vmem:[%s1214 + $0x178] sm:$0xff]
        %v1263 = vld [vmem:[%s1214 + $0x180] sm:$0xff]
        %v1264 = vld [vmem:[%s1214 + $0x188] sm:$0xff]
        %v1265 = vld [vmem:[%s1214 + $0x190] sm:$0xff]
        %v1266 = vld [vmem:[%s1214 + $0x198] sm:$0xff]
        %v1267 = vld [vmem:[%s1214 + $0x1a0] sm:$0xff]
        %v1268 = vld [vmem:[%s1214 + $0x1a8] sm:$0xff]
        %v1269 = vld [vmem:[%s1214 + $0x1b0] sm:$0xff]
        %v1270 = vld [vmem:[%s1214 + $0x1b8] sm:$0xff]
        %v1271 = vld [vmem:[%s1214 + $0x1c0] sm:$0xff]
        %v1272 = vld [vmem:[%s1214 + $0x1c8] sm:$0xff]
        %v1273 = vld [vmem:[%s1214 + $0x1d0] sm:$0xff]
        %v1274 = vld [vmem:[%s1214 + $0x1d8] sm:$0xff]
        %v1275 = vld [vmem:[%s1214 + $0x1e0] sm:$0xff]
        %v1276 = vld [vmem:[%s1214 + $0x1e8] sm:$0xff]
        %v1277 = vld [vmem:[%s1214 + $0x1f0] sm:$0xff]
        %v1278 = vld [vmem:[%s1214 + $0x1f8] sm:$0xff]
        %v1279 = vld [vmem:[%s1214 + $0x200] sm:$0xff]
        %v1280 = vld [vmem:[%s1214 + $0x208] sm:$0xff]
        %v1281 = vld [vmem:[%s1214 + $0x210] sm:$0xff]
        %v1282 = vld [vmem:[%s1214 + $0x218] sm:$0xff]
        %v1283 = vld [vmem:[%s1214 + $0x220] sm:$0xff]
        %v1284 = vld [vmem:[%s1214 + $0x228] sm:$0xff]
        %v1285 = vld [vmem:[%s1214 + $0x230] sm:$0xff]
        %v1286 = vld [vmem:[%s1214 + $0x238] sm:$0xff]
        %v1287 = vld [vmem:[%s1214 + $0x240] sm:$0xff]
        %v1288 = vld [vmem:[%s1214 + $0x248] sm:$0xff]
        %v1289 = vld [vmem:[%s1214 + $0x250] sm:$0xff]
        %v1290 = vld [vmem:[%s1214 + $0x258] sm:$0xff]
        %v1291 = vld [vmem:[%s1214 + $0x260] sm:$0xff]
        %v1292 = vld [vmem:[%s1214 + $0x268] sm:$0xff]
        %v1293 = vld [vmem:[%s1214 + $0x270] sm:$0xff]
        %v1294 = vld [vmem:[%s1214 + $0x278] sm:$0xff]
        %v1295 = vld [vmem:[%s1214 + $0x280] sm:$0xff]
        %v1296 = vld [vmem:[%s1214 + $0x288] sm:$0xff]
        %v1297 = vld [vmem:[%s1214 + $0x290] sm:$0xff]
        %v1298 = vld [vmem:[%s1214 + $0x298] sm:$0xff]
        %v1299 = vld [vmem:[%s1214 + $0x2a0] sm:$0xff]
        %v1300 = vld [vmem:[%s1214 + $0x2a8] sm:$0xff]
        %v1301 = vld [vmem:[%s1214 + $0x2b0] sm:$0xff]
        %v1302 = vld [vmem:[%s1214 + $0x2b8] sm:$0xff]
        %v1303 = vld [vmem:[%s1214 + $0x2c0] sm:$0xff]
        %v1304 = vld [vmem:[%s1214 + $0x2c8] sm:$0xff]
        %v1305 = vld [vmem:[%s1214 + $0x2d0] sm:$0xff]
        %v1306 = vld [vmem:[%s1214 + $0x2d8] sm:$0xff]
        %v1307 = vld [vmem:[%s1214 + $0x2e0] sm:$0xff]
        %v1308 = vld [vmem:[%s1214 + $0x2e8] sm:$0xff]
        %v1309 = vld [vmem:[%s1214 + $0x2f0] sm:$0xff]
        %v1310 = vld [vmem:[%s1214 + $0x2f8] sm:$0xff]
        %v1311 = vld [vmem:[%s1214 + $0x300] sm:$0xff]
        %v1312 = vld [vmem:[%s1214 + $0x308] sm:$0xff]
        %v1313 = vld [vmem:[%s1214 + $0x310] sm:$0xff]
        %v1314 = vld [vmem:[%s1214 + $0x318] sm:$0xff]
        %v1315 = vld [vmem:[%s1214 + $0x320] sm:$0xff]
        %v1316 = vld [vmem:[%s1214 + $0x328] sm:$0xff]
        %v1317 = vld [vmem:[%s1214 + $0x330] sm:$0xff]
        %v1318 = vld [vmem:[%s1214 + $0x338] sm:$0xff]
        %v1319 = vld [vmem:[%s1214 + $0x340] sm:$0xff]
        %v1320 = vld [vmem:[%s1214 + $0x348] sm:$0xff]
        %v1321 = vld [vmem:[%s1214 + $0x350] sm:$0xff]
        %v1322 = vld [vmem:[%s1214 + $0x358] sm:$0xff]
        %v1323 = vld [vmem:[%s1214 + $0x360] sm:$0xff]
        %v1324 = vld [vmem:[%s1214 + $0x368] sm:$0xff]
        %v1325 = vld [vmem:[%s1214 + $0x370] sm:$0xff]
        %v1326 = vld [vmem:[%s1214 + $0x378] sm:$0xff]
        %v1327 = vld [vmem:[%s1214 + $0x380] sm:$0xff]
        %v1328 = vld [vmem:[%s1214 + $0x388] sm:$0xff]
        %v1329 = vld [vmem:[%s1214 + $0x390] sm:$0xff]
        %v1330 = vld [vmem:[%s1214 + $0x398] sm:$0xff]
        %v1331 = vld [vmem:[%s1214 + $0x3a0] sm:$0xff]
        %v1332 = vld [vmem:[%s1214 + $0x3a8] sm:$0xff]
        %v1333 = vld [vmem:[%s1214 + $0x3b0] sm:$0xff]
        %v1334 = vld [vmem:[%s1214 + $0x3b8] sm:$0xff]
        %v1335 = vld [vmem:[%s1214 + $0x3c0] sm:$0xff]
        %v1336 = vld [vmem:[%s1214 + $0x3c8] sm:$0xff]
        %v1337 = vld [vmem:[%s1214 + $0x3d0] sm:$0xff]
        %v1338 = vld [vmem:[%s1214 + $0x3d8] sm:$0xff]
        %v1339 = vld [vmem:[%s1214 + $0x3e0] sm:$0xff]
        %v1340 = vld [vmem:[%s1214 + $0x3e8] sm:$0xff]
        %v1341 = vld [vmem:[%s1214 + $0x3f0] sm:$0xff]
        %v1342 = vld [vmem:[%s1214 + $0x3f8] sm:$0xff]
        %vm1347 = vcmask 1045504
        %v1348 = vrot.slane %v1210, 2
        %v1349 = vrot.slane %v558, 2
        %v1350 = vsel %vm1347, %v1348, %v1349
        %v1351 = vrot.slane %v1211, 2
        %v1352 = vrot.slane %v559, 2
        %v1353 = vsel %vm1347, %v1351, %v1352
        %v1354 = vrot.slane %v1212, 2
        %v1355 = vsel %vm1347, %v1349, %v1354
        %v1356 = vrot.slane %v1213, 2
        %v1357 = vsel %vm1347, %v1352, %v1356
        %1362 = vmatpush.msra.mxu0 %v1275
        %1363 = vmatpush.msra.mxu0 %v1271
        %1364 = vmatpush.msra.mxu0 %v1267
        %1365 = vmatpush.msra.mxu0 %v1263
        %1366 = vmatpush.msra.mxu0 %v1259
        %1367 = vmatpush.msra.mxu0 %v1255
        %1368 = vmatpush.msra.mxu0 %v1251
        %1369 = vmatpush.msra.mxu0 %v1247
        %1370 = vmatpush.msra.mxu0 %v1243
        %1371 = vmatpush.msra.mxu0 %v1239
        %1372 = vmatpush.msra.mxu0 %v1235
        %1373 = vmatpush.msra.mxu0 %v1231
        %1374 = vmatpush.msra.mxu0 %v1227
        %1375 = vmatpush.msra.mxu0 %v1223
        %1376 = vmatpush.msra.mxu0 %v1219
        %1377 = vmatpush.msra.mxu0 %v1215
        %1378 = vmatmul.f32.gmra.mxu0 %v1350
        %v1379 = vpop.f32.mrf.mxu0
        %v1380 = vadd.f32 0.0, %v1379
        %1381 = vmatmul.f32.gmra.mxu0 %v1355
        %v1382 = vpop.f32.mrf.mxu0
        %v1383 = vadd.f32 0.0, %v1382
        %1384 = vdwg.mxu0
        %1385 = vmatpush.msra.mxu0 %v1339
        %1386 = vmatpush.msra.mxu0 %v1335
        %1387 = vmatpush.msra.mxu0 %v1331
        %1388 = vmatpush.msra.mxu0 %v1327
        %1389 = vmatpush.msra.mxu0 %v1323
        %1390 = vmatpush.msra.mxu0 %v1319
        %1391 = vmatpush.msra.mxu0 %v1315
        %1392 = vmatpush.msra.mxu0 %v1311
        %1393 = vmatpush.msra.mxu0 %v1307
        %1394 = vmatpush.msra.mxu0 %v1303
        %1395 = vmatpush.msra.mxu0 %v1299
        %1396 = vmatpush.msra.mxu0 %v1295
        %1397 = vmatpush.msra.mxu0 %v1291
        %1398 = vmatpush.msra.mxu0 %v1287
        %1399 = vmatpush.msra.mxu0 %v1283
        %1400 = vmatpush.msra.mxu0 %v1279
        %1401 = vmatmul.f32.gmra.mxu0 %v1353
        %v1402 = vpop.f32.mrf.mxu0
        %v1403 = vadd.f32 %v1380, %v1402
        %1404 = vmatmul.f32.gmra.mxu0 %v1357
        %v1405 = vpop.f32.mrf.mxu0
        %v1406 = vadd.f32 %v1383, %v1405
        %1407 = vdwg.mxu0
        %1408 = vmatpush.msra.mxu0 %v1276
        %1409 = vmatpush.msra.mxu0 %v1272
        %1410 = vmatpush.msra.mxu0 %v1268
        %1411 = vmatpush.msra.mxu0 %v1264
        %1412 = vmatpush.msra.mxu0 %v1260
        %1413 = vmatpush.msra.mxu0 %v1256
        %1414 = vmatpush.msra.mxu0 %v1252
        %1415 = vmatpush.msra.mxu0 %v1248
        %1416 = vmatpush.msra.mxu0 %v1244
        %1417 = vmatpush.msra.mxu0 %v1240
        %1418 = vmatpush.msra.mxu0 %v1236
        %1419 = vmatpush.msra.mxu0 %v1232
        %1420 = vmatpush.msra.mxu0 %v1228
        %1421 = vmatpush.msra.mxu0 %v1224
        %1422 = vmatpush.msra.mxu0 %v1220
        %1423 = vmatpush.msra.mxu0 %v1216
        %1424 = vmatmul.f32.gmra.mxu0 %v1350
        %v1425 = vpop.f32.mrf.mxu0
        %v1426 = vadd.f32 0.0, %v1425
        %1427 = vmatmul.f32.gmra.mxu0 %v1355
        %v1428 = vpop.f32.mrf.mxu0
        %v1429 = vadd.f32 0.0, %v1428
        %1430 = vdwg.mxu0
        %1431 = vmatpush.msra.mxu0 %v1340
        %1432 = vmatpush.msra.mxu0 %v1336
        %1433 = vmatpush.msra.mxu0 %v1332
        %1434 = vmatpush.msra.mxu0 %v1328
        %1435 = vmatpush.msra.mxu0 %v1324
        %1436 = vmatpush.msra.mxu0 %v1320
        %1437 = vmatpush.msra.mxu0 %v1316
        %1438 = vmatpush.msra.mxu0 %v1312
        %1439 = vmatpush.msra.mxu0 %v1308
        %1440 = vmatpush.msra.mxu0 %v1304
        %1441 = vmatpush.msra.mxu0 %v1300
        %1442 = vmatpush.msra.mxu0 %v1296
        %1443 = vmatpush.msra.mxu0 %v1292
        %1444 = vmatpush.msra.mxu0 %v1288
        %1445 = vmatpush.msra.mxu0 %v1284
        %1446 = vmatpush.msra.mxu0 %v1280
        %1447 = vmatmul.f32.gmra.mxu0 %v1353
        %v1448 = vpop.f32.mrf.mxu0
        %v1449 = vadd.f32 %v1426, %v1448
        %1450 = vmatmul.f32.gmra.mxu0 %v1357
        %v1451 = vpop.f32.mrf.mxu0
        %v1452 = vadd.f32 %v1429, %v1451
        %1453 = vdwg.mxu0
        %1454 = vmatpush.msra.mxu0 %v1277
        %1455 = vmatpush.msra.mxu0 %v1273
        %1456 = vmatpush.msra.mxu0 %v1269
        %1457 = vmatpush.msra.mxu0 %v1265
        %1458 = vmatpush.msra.mxu0 %v1261
        %1459 = vmatpush.msra.mxu0 %v1257
        %1460 = vmatpush.msra.mxu0 %v1253
        %1461 = vmatpush.msra.mxu0 %v1249
        %1462 = vmatpush.msra.mxu0 %v1245
        %1463 = vmatpush.msra.mxu0 %v1241
        %1464 = vmatpush.msra.mxu0 %v1237
        %1465 = vmatpush.msra.mxu0 %v1233
        %1466 = vmatpush.msra.mxu0 %v1229
        %1467 = vmatpush.msra.mxu0 %v1225
        %1468 = vmatpush.msra.mxu0 %v1221
        %1469 = vmatpush.msra.mxu0 %v1217
        %1470 = vmatmul.f32.gmra.mxu0 %v1350
        %v1471 = vpop.f32.mrf.mxu0
        %v1472 = vadd.f32 0.0, %v1471
        %1473 = vmatmul.f32.gmra.mxu0 %v1355
        %v1474 = vpop.f32.mrf.mxu0
        %v1475 = vadd.f32 0.0, %v1474
        %1476 = vdwg.mxu0
        %1477 = vmatpush.msra.mxu0 %v1341
        %1478 = vmatpush.msra.mxu0 %v1337
        %1479 = vmatpush.msra.mxu0 %v1333
        %1480 = vmatpush.msra.mxu0 %v1329
        %1481 = vmatpush.msra.mxu0 %v1325
        %1482 = vmatpush.msra.mxu0 %v1321
        %1483 = vmatpush.msra.mxu0 %v1317
        %1484 = vmatpush.msra.mxu0 %v1313
        %1485 = vmatpush.msra.mxu0 %v1309
        %1486 = vmatpush.msra.mxu0 %v1305
        %1487 = vmatpush.msra.mxu0 %v1301
        %1488 = vmatpush.msra.mxu0 %v1297
        %1489 = vmatpush.msra.mxu0 %v1293
        %1490 = vmatpush.msra.mxu0 %v1289
        %1491 = vmatpush.msra.mxu0 %v1285
        %1492 = vmatpush.msra.mxu0 %v1281
        %1493 = vmatmul.f32.gmra.mxu0 %v1353
        %v1494 = vpop.f32.mrf.mxu0
        %v1495 = vadd.f32 %v1472, %v1494
        %1496 = vmatmul.f32.gmra.mxu0 %v1357
        %v1497 = vpop.f32.mrf.mxu0
        %v1498 = vadd.f32 %v1475, %v1497
        %1499 = vdwg.mxu0
        %1500 = vmatpush.msra.mxu0 %v1278
        %1501 = vmatpush.msra.mxu0 %v1274
        %1502 = vmatpush.msra.mxu0 %v1270
        %1503 = vmatpush.msra.mxu0 %v1266
        %1504 = vmatpush.msra.mxu0 %v1262
        %1505 = vmatpush.msra.mxu0 %v1258
        %1506 = vmatpush.msra.mxu0 %v1254
        %1507 = vmatpush.msra.mxu0 %v1250
        %1508 = vmatpush.msra.mxu0 %v1246
        %1509 = vmatpush.msra.mxu0 %v1242
        %1510 = vmatpush.msra.mxu0 %v1238
        %1511 = vmatpush.msra.mxu0 %v1234
        %1512 = vmatpush.msra.mxu0 %v1230
        %1513 = vmatpush.msra.mxu0 %v1226
        %1514 = vmatpush.msra.mxu0 %v1222
        %1515 = vmatpush.msra.mxu0 %v1218
        %1516 = vmatmul.f32.gmra.mxu0 %v1350
        %v1517 = vpop.f32.mrf.mxu0
        %v1518 = vadd.f32 0.0, %v1517
        %1519 = vmatmul.f32.gmra.mxu0 %v1355
        %v1520 = vpop.f32.mrf.mxu0
        %v1521 = vadd.f32 0.0, %v1520
        %1522 = vdwg.mxu0
        %1523 = vmatpush.msra.mxu0 %v1342
        %1524 = vmatpush.msra.mxu0 %v1338
        %1525 = vmatpush.msra.mxu0 %v1334
        %1526 = vmatpush.msra.mxu0 %v1330
        %1527 = vmatpush.msra.mxu0 %v1326
        %1528 = vmatpush.msra.mxu0 %v1322
        %1529 = vmatpush.msra.mxu0 %v1318
        %1530 = vmatpush.msra.mxu0 %v1314
        %1531 = vmatpush.msra.mxu0 %v1310
        %1532 = vmatpush.msra.mxu0 %v1306
        %1533 = vmatpush.msra.mxu0 %v1302
        %1534 = vmatpush.msra.mxu0 %v1298
        %1535 = vmatpush.msra.mxu0 %v1294
        %1536 = vmatpush.msra.mxu0 %v1290
        %1537 = vmatpush.msra.mxu0 %v1286
        %1538 = vmatpush.msra.mxu0 %v1282
        %1539 = vmatmul.f32.gmra.mxu0 %v1353
        %v1540 = vpop.f32.mrf.mxu0
        %v1541 = vadd.f32 %v1518, %v1540
        %1542 = vmatmul.f32.gmra.mxu0 %v1357
        %v1543 = vpop.f32.mrf.mxu0
        %v1544 = vadd.f32 %v1521, %v1543
        %1545 = vdwg.mxu0
        %v1546 = vadd.f32 %v1067, %v1403
        %v1547 = vadd.f32 %v1113, %v1449
        %v1548 = vadd.f32 %v1159, %v1495
        %v1549 = vadd.f32 %v1205, %v1541
        %v1550 = vadd.f32 %v1070, %v1406
        %v1551 = vadd.f32 %v1116, %v1452
        %v1552 = vadd.f32 %v1162, %v1498
        %v1553 = vadd.f32 %v1208, %v1544
        %v1554 = vld [vmem:[#allocation9] sm:$0xf]
        %v1556 = vperm.slane %v1554, 0
        %v1557 = vperm.slane %v1554, 1
        %v1558 = vperm.slane %v1554, 2
        %v1559 = vperm.slane %v1554, 3
        %v1564 = vadd.f32 %v1546, %v1556
        %v1565 = vadd.f32 %v1547, %v1557
        %v1566 = vadd.f32 %v1548, %v1558
        %v1567 = vadd.f32 %v1549, %v1559
        %v1568 = vadd.f32 %v1550, %v1556
        %v1569 = vadd.f32 %v1551, %v1557
        %v1570 = vadd.f32 %v1552, %v1558
        %v1571 = vadd.f32 %v1553, %v1559
        %v1572 = vmax.f32 %v1564, 0.0
        %v1573 = vmax.f32 %v1565, 0.0
        %v1574 = vmax.f32 %v1566, 0.0
        %v1575 = vmax.f32 %v1567, 0.0
        %v1576 = vmax.f32 %v1568, 0.0
        %v1577 = vmax.f32 %v1569, 0.0
        %v1578 = vmax.f32 %v1570, 0.0
        %v1579 = vmax.f32 %v1571, 0.0
        %1580 = vst [vmem:[%s287] sm:$0xff] %v1572
        %1581 = vst [vmem:[%s287 + $0x8] sm:$0xff] %v1573
        %1582 = vst [vmem:[%s287 + $0x10] sm:$0xff] %v1574
        %1583 = vst [vmem:[%s287 + $0x18] sm:$0xff] %v1575
        %1584 = vst [vmem:[%s287 + $0x20] sm:$0xff] %v1576
        %1585 = vst [vmem:[%s287 + $0x28] sm:$0xff] %v1577
        %1586 = vst [vmem:[%s287 + $0x30] sm:$0xff] %v1578
        %1587 = vst [vmem:[%s287 + $0x38] sm:$0xff] %v1579
        %p1588 = scmp.lt.s32.totalorder %s19, 1
        %s1589 = scalar_select %p1588, %s19, 1
        %s1590 = smul.addr %s1589, 8
        %s1591 = smul.addr %s1590, 8
        %s1592 = scalar_lea.vmem %s5, %s1591
        // Predicated region
        $region57: #{sequential_backbone_forward.1} parent=39 // pred_check
          %p1593 = pneg %p147
        $region58: #{sequential_backbone_forward.1} parent=39 // pred_check_branch
          %1595 = sbr.rel (%p1593) target = $region60
        $region59: #{sequential_backbone_forward.1} parent=39 // pred_region
          _
        $region60: #{sequential_backbone_forward.1} parent=39 // pred_fallthru
          _
      $region40: #{sequential_backbone_forward.1} parent=5 // pred_fallthru
        _
      %p1596 = scmp.le.s32.totalorder 2, %s14
      // Predicated region
      $region61: #{sequential_backbone_forward.1} parent=5 // pred_check
        %p1597 = pneg %p1596
      $region62: #{sequential_backbone_forward.1} parent=5 // pred_check_branch
        %1599 = sbr.rel (%p1597) target = $region64
      $region63: #{sequential_backbone_forward.1} parent=5 // pred_region
        %s1600 = ssub.s32 %s14, 2
        // Predicated region
        $region65: #{sequential_backbone_forward.1} parent=63 // pred_check
          %p1601 = pneg %p153
        $region66: #{sequential_backbone_forward.1} parent=63 // pred_check_branch
          %1603 = sbr.rel (%p1601) target = $region68
        $region67: #{sequential_backbone_forward.1} parent=63 // pred_region
          %p1604 = scmp.lt.s32.totalorder %s20, 1
          %s1605 = scalar_select %p1604, %s20, 1
          %s1606 = smul.addr %s1605, 8
          %s1607 = smul.addr %s1606, 8
          %s1608 = scalar_lea.vmem %s5, %s1607
        $region68: #{sequential_backbone_forward.1} parent=63 // pred_fallthru
          _
      $region64: #{sequential_backbone_forward.1} parent=5 // pred_fallthru
        _
    $region6: #{sequential_backbone_forward.1} parent=1 // loop_footer
      %s18 = sadd.s32 1, %s14
    $region7: #{sequential_backbone_forward.1} parent=1 // loop_footer_branch
      %13 = sbr.rel target = $region3
    $region8: #{sequential_backbone_forward.1} parent=1 // loop_exit
      _
    %1609 = vsyncpa [#allocation5], 1
    %s1610 = scalar_lea.sflag [#allocation5], 1
    %1611 = vsyncpa %s1610, 1
    %1612 = vsyncpa [#allocation7], 1
    %1613 = vsyncpa [#allocation10], 1

</llo_original>
